<compile_context>
chip_gen: v5e
topology: v5e:2x2
jax: 0.10.0
libtpu: 0.0.40
codegen_flags: <defaults>
</compile_context>

<pallas_src>
import functools

import jax
import jax.numpy as jnp
from jax.experimental import pallas as pl
from jax.experimental.pallas import tpu as pltpu


def _round_up(n, m):
    return ((n + m - 1) // m) * m


def prepare_params(params):
    """Pack torch-layout parameters once into a single (R, Hp) f32 buffer.

    params: W_query_w (H, Q), W_query_b (H,), W_ref_w (H, H), V (H, 1).
    hidden is zero-padded to Hp = round_up(H, 128) so all kernel tiles are
    lane-dense.  Row sections (all 8-aligned):
        [0, Q)            : W_query^T (Q, Hp)
        [r_bias]          : bias row  (1, Hp)
        [r_wr, r_wr + Hp) : W_ref^T   (Hp, Hp)
        [r_v]             : V^T       (1, Hp)
    """
    wq_t = jnp.asarray(params["W_query_w"], jnp.float32).T      # (Q, H)
    bias = jnp.asarray(params["W_query_b"], jnp.float32)        # (H,)
    wr_t = jnp.asarray(params["W_ref_w"], jnp.float32).T        # (H, H)
    v_row = jnp.asarray(params["V"], jnp.float32).reshape(-1)   # (H,)

    q_size, hidden = wq_t.shape
    hp = _round_up(hidden, 128)

    r_bias = _round_up(q_size, 8)
    r_wr = r_bias + 8
    r_v = r_wr + hp
    rows = r_v + 8

    packed = jnp.zeros((rows, hp), jnp.float32)
    packed = packed.at[:q_size, :hidden].set(wq_t)
    packed = packed.at[r_bias, :hidden].set(bias)
    packed = packed.at[r_wr:r_wr + hidden, :hidden].set(wr_t)
    packed = packed.at[r_v, :hidden].set(v_row)

    meta = dict(q_size=q_size, hidden=hidden, hidden_padded=hp,
                r_bias=r_bias, r_wr=r_wr, r_v=r_v)
    return packed, meta


def _attention_kernel(q_ref, keys_ref, p_ref, out_ref, *,
                      q_size, n_items, r_bias, r_wr, r_v):
    # q_ref: (Bt, Q)  keys_ref: (Bt, Np, Hp)  p_ref: (R, Hp)  out_ref: (Bt, Hp)
    bt, n_pad, hp = keys_ref.shape

    wq = p_ref[0:q_size, :]               # (Q, Hp)
    b = p_ref[r_bias:r_bias + 1, :]       # (1, Hp)
    wr = p_ref[r_wr:r_wr + hp, :]         # (Hp, Hp)
    v = p_ref[r_v:r_v + 1, :]             # (1, Hp)  -- V kept lane-dense

    q = q_ref[...]                        # (Bt, Q)    f32
    keys = keys_ref[...]                  # (Bt, Np, Hp) f32

    # W_query(query) + b  -> (Bt, Hp); small matmul, stays f32.
    q_proj = jnp.dot(q, wq, preferred_element_type=jnp.float32) + b

    # W_ref(keys) -> (Bt, Np, Hp); dominant matmul over merged (Bt*Np) rows.
    # bf16 operands on the MXU, f32 accumulate.
    k_proj = jnp.dot(
        keys.reshape(bt * n_pad, hp).astype(jnp.bfloat16),
        wr.astype(jnp.bfloat16),
        preferred_element_type=jnp.float32,
    ).reshape(bt, n_pad, hp)

    m = jnp.tanh(q_proj[:, None, :] + k_proj)                    # (Bt, Np, Hp)

    # att_score = m @ V, as a VPU multiply + lane reduce -> (Bt, Np, 1)
    score = jnp.sum(m * v[None, :, :], axis=-1, keepdims=True)

    if n_pad != n_items:  # mask padded (zero) items out of the softmax
        item = jax.lax.broadcasted_iota(jnp.int32, (bt, n_pad, 1), 1)
        score = jnp.where(item < n_items, score, -jnp.inf)

    # softmax over the item axis (dim 1)
    mx = jnp.max(score, axis=1, keepdims=True)
    e = jnp.exp(score - mx)
    inv = pl.reciprocal(jnp.sum(e, axis=1, keepdims=True), approx=True)
    attn = e * inv                                               # (Bt, Np, 1)

    # ret = a1*x1 + ... + aN*xN  -> (Bt, Hp); lane/sublane-dense output block.
    out_ref[...] = jnp.sum(attn * keys, axis=1).astype(out_ref.dtype)


def attention_forward_batched(queries, keys, packed_params, meta, *, block_b=128):
    """queries: (B, Q), keys: (B, N, H)  ->  (B, H)."""
    bsz, q_size = queries.shape
    _, n_items, hidden = keys.shape
    assert q_size == meta["q_size"] and hidden == meta["hidden"]
    hp = meta["hidden_padded"]
    n_pad = _round_up(n_items, 8)

    # Batch tile: as large as requested, but keep >= 2 grid steps when the batch
    # allows it so v7x can shard steps across its 2 TensorCores.
    bt = min(block_b, max(8, _round_up(-(-bsz // 2), 8)))
    bp = _round_up(bsz, bt)

    queries = jnp.asarray(queries, jnp.float32)
    keys = jnp.asarray(keys, jnp.float32)
    if bp != bsz:
        queries = jnp.pad(queries, ((0, bp - bsz), (0, 0)))
        keys = jnp.pad(keys, ((0, bp - bsz), (0, 0), (0, 0)))
    if n_pad != n_items or hp != hidden:
        keys = jnp.pad(keys, ((0, 0), (0, n_pad - n_items), (0, hp - hidden)))

    rows = packed_params.shape[0]
    kernel = functools.partial(
        _attention_kernel, q_size=q_size, n_items=n_items,
        r_bias=meta["r_bias"], r_wr=meta["r_wr"], r_v=meta["r_v"])

    flops = (2 * bp * q_size * hp + 2 * bp * n_pad * hp * hp
             + 6 * bp * n_pad * hp + 10 * bp * n_pad)
    cost = pl.CostEstimate(
        flops=flops,
        transcendentals=bp * n_pad * (hp + 1) + bp,
        bytes_accessed=4 * (bp * q_size + bp * n_pad * hp
                            + rows * hp + bp * hp))

    # Explicit VMEM budget (double-buffered blocks + big intermediates); only
    # raise the scoped limit when actually needed, capped for v7x's 64 MiB/TC.
    per_step_bytes = 4 * (2 * bt * q_size + 2 * bt * n_pad * hp + 2 * bt * hp
                          + rows * hp + 3 * bt * n_pad * hp)
    compiler_kwargs = dict(dimension_semantics=("parallel",))
    if per_step_bytes > 28 * 1024 * 1024:
        compiler_kwargs["vmem_limit_bytes"] = min(
            int(per_step_bytes * 5 // 4), 60 * 1024 * 1024)

    out = pl.pallas_call(
        kernel,
        out_shape=jax.ShapeDtypeStruct((bp, hp), jnp.float32),
        grid=(bp // bt,),
        in_specs=[
            pl.BlockSpec((bt, q_size), lambda i: (i, 0)),
            pl.BlockSpec((bt, n_pad, hp), lambda i: (i, 0, 0)),
            pl.BlockSpec((rows, hp), lambda i: (0, 0)),   # weights: fetched once
        ],
        out_specs=pl.BlockSpec((bt, hp), lambda i: (i, 0)),
        compiler_params=pltpu.CompilerParams(**compiler_kwargs),
        cost_estimate=cost,
    )(queries, keys, packed_params)

    return out[:bsz, :hidden]


def attention_forward(query, keys, packed_params, meta, *, block_b=8):
    """query: (Q,), keys: (N, H). Returns (1, H) like torch Attention.forward."""
    # TODO(synk): single-instance calls are launch/DMA-latency bound; batch them
    # upstream (attention_forward_batched) when this sits in a hot loop.
    out = attention_forward_batched(query[None, :], keys[None, ...],
                                    packed_params, meta, block_b=block_b)
    return out[0:1]


def _reference_batched(queries, keys, params):
    hp = jax.lax.Precision.HIGHEST
    qp = jnp.dot(queries, params["W_query_w"].T, precision=hp) + params["W_query_b"]
    kp = jnp.einsum("bnh,oh->bno", keys, params["W_ref_w"], precision=hp)
    m = jnp.tanh(qp[:, None, :] + kp)
    score = jnp.einsum("bnh,h->bn", m, params["V"][:, 0], precision=hp)
    attn = jax.nn.softmax(score, axis=-1)
    return jnp.einsum("bn,bnh->bh", attn, keys, precision=hp)


if __name__ == "__main__":
    def make_params(key, hidden_size, query_size):
        k1, k2, k3, k4 = jax.random.split(key, 4)
        return {
            "W_query_w": jax.random.normal(k1, (hidden_size, query_size), jnp.float32) * 0.1,
            "W_query_b": jax.random.normal(k2, (hidden_size,), jnp.float32) * 0.1,
            "W_ref_w": jax.random.normal(k3, (hidden_size, hidden_size), jnp.float32) * 0.1,
            "V": jax.random.normal(k4, (hidden_size, 1), jnp.float32) * 1e-4,
        }

    root = jax.random.PRNGKey(0)
    kp1, kd1, kp2, kd2 = jax.random.split(root, 4)

    # Case A: batched, lane-dense hidden (H=128), 64 instances -> 2 grid steps.
    hidden, qsize, n_items, batch = 128, 16, 8, 64
    params_a = make_params(kp1, hidden, qsize)
    packed_a, meta_a = prepare_params(params_a)
    kq, kk = jax.random.split(kd1)
    queries = jax.random.normal(kq, (batch, qsize), jnp.float32)
    keys = jax.random.normal(kk, (batch, n_items, hidden), jnp.float32)

    out_a = jax.block_until_ready(
        attention_forward_batched(queries, keys, packed_a, meta_a, block_b=128))
    ref_a = _reference_batched(queries, keys, params_a)
    assert out_a.shape == (batch, hidden), out_a.shape
    assert jnp.allclose(out_a, ref_a, atol=1e-2, rtol=1e-2), \
        float(jnp.max(jnp.abs(out_a - ref_a)))

    # Case B: original single-instance signature (query: [Q], keys: [N, H]), H=32
    # (hidden is zero-padded to 128 lanes inside the wrapper / prepare_params).
    hidden_b, qsize_b, n_items_b = 32, 16, 8
    params_b = make_params(kp2, hidden_b, qsize_b)
    packed_b, meta_b = prepare_params(params_b)
    kq2, kk2 = jax.random.split(kd2)
    query_1 = jax.random.normal(kq2, (qsize_b,), jnp.float32)
    keys_1 = jax.random.normal(kk2, (n_items_b, hidden_b), jnp.float32)

    out_b = jax.block_until_ready(
        attention_forward(query_1, keys_1, packed_b, meta_b))
    ref_b = _reference_batched(query_1[None, :], keys_1[None, ...], params_b)
    assert out_b.shape == (1, hidden_b), out_b.shape
    assert jnp.allclose(out_b, ref_b, atol=1e-2, rtol=1e-2), \
        float(jnp.max(jnp.abs(out_b - ref_b)))

    print("KERNEL_OK")
</pallas_src>

<mosaic_0001>
module attributes {stable_mosaic.version = 11 : i64} {
  func.func @_attention_kernel(%arg0: i32, %arg1: memref<32x16xf32, #tpu.memory_space<vmem>>, %arg2: memref<32x8x128xf32, #tpu.memory_space<vmem>>, %arg3: memref<160x128xf32, #tpu.memory_space<vmem>>, %arg4: memref<32x128xf32, #tpu.memory_space<vmem>>) attributes {dimension_semantics = [#tpu.dimension_semantics<parallel>], iteration_bounds = array<i64: 2>, scalar_prefetch = 0 : i64, scratch_operands = 0 : i64, tpu.core_type = #tpu.core_type<tc>, window_params = [{transform_indices = @transform_0, window_bounds = array<i64: 32, 16>}, {transform_indices = @transform_1, window_bounds = array<i64: 32, 8, 128>}, {pipeline_mode = #tpu.pipeline_mode<synchronous>, transform_indices = @transform_2, window_bounds = array<i64: 160, 128>}, {transform_indices = @transform_3, window_bounds = array<i64: 32, 128>}]} {
    %c0 = arith.constant 0 : index
    %c0_0 = arith.constant 0 : index
    %0 = vector.load %arg3[%c0, %c0_0] : memref<160x128xf32, #tpu.memory_space<vmem>>, vector<16x128xf32>
    %c16 = arith.constant 16 : index
    %c0_1 = arith.constant 0 : index
    %1 = vector.load %arg3[%c16, %c0_1] : memref<160x128xf32, #tpu.memory_space<vmem>>, vector<1x128xf32>
    %c24 = arith.constant 24 : index
    %c0_2 = arith.constant 0 : index
    %2 = vector.load %arg3[%c24, %c0_2] : memref<160x128xf32, #tpu.memory_space<vmem>>, vector<128x128xf32>
    %c152 = arith.constant 152 : index
    %c0_3 = arith.constant 0 : index
    %3 = vector.load %arg3[%c152, %c0_3] : memref<160x128xf32, #tpu.memory_space<vmem>>, vector<1x128xf32>
    %c0_4 = arith.constant 0 : index
    %c0_5 = arith.constant 0 : index
    %4 = vector.load %arg1[%c0_4, %c0_5] : memref<32x16xf32, #tpu.memory_space<vmem>>, vector<32x16xf32>
    %c0_6 = arith.constant 0 : index
    %c0_7 = arith.constant 0 : index
    %c0_8 = arith.constant 0 : index
    %5 = vector.load %arg2[%c0_6, %c0_7, %c0_8] : memref<32x8x128xf32, #tpu.memory_space<vmem>>, vector<32x8x128xf32>
    %cst = arith.constant dense<0.000000e+00> : vector<32x128xf32>
    %6 = tpu.matmul %4, %0, %cst {dimension_numbers = #tpu.dot_dimension_numbers<[1], [0], [0], [1], [0, 0, 1, 1], [], []>} : vector<32x16xf32>, vector<16x128xf32>, vector<32x128xf32> -> vector<32x128xf32>
    %7 = vector.broadcast %1 : vector<1x128xf32> to vector<32x128xf32>
    %8 = arith.addf %6, %7 : vector<32x128xf32>
    %9 = vector.shape_cast %5 : vector<32x8x128xf32> to vector<256x128xf32>
    %10 = arith.truncf %9 : vector<256x128xf32> to vector<256x128xbf16>
    %11 = arith.truncf %2 : vector<128x128xf32> to vector<128x128xbf16>
    %cst_9 = arith.constant dense<0.000000e+00> : vector<256x128xf32>
    %12 = tpu.matmul %10, %11, %cst_9 {dimension_numbers = #tpu.dot_dimension_numbers<[1], [0], [0], [1], [0, 0, 1, 1], [], []>} : vector<256x128xbf16>, vector<128x128xbf16>, vector<256x128xf32> -> vector<256x128xf32>
    %13 = vector.shape_cast %12 : vector<256x128xf32> to vector<32x8x128xf32>
    %14 = vector.shape_cast %8 : vector<32x128xf32> to vector<32x1x128xf32>
    %15 = vector.broadcast %14 : vector<32x1x128xf32> to vector<32x8x128xf32>
    %16 = arith.addf %15, %13 : vector<32x8x128xf32>
    %17 = math.tanh %16 : vector<32x8x128xf32>
    %18 = vector.shape_cast %3 : vector<1x128xf32> to vector<1x1x128xf32>
    %19 = vector.broadcast %18 : vector<1x1x128xf32> to vector<32x8x128xf32>
    %20 = arith.mulf %17, %19 : vector<32x8x128xf32>
    %cst_10 = arith.constant dense<0.000000e+00> : vector<32x8xf32>
    %21 = vector.multi_reduction <add>, %20, %cst_10 [2] : vector<32x8x128xf32> to vector<32x8xf32>
    %22 = vector.shape_cast %21 : vector<32x8xf32> to vector<32x8x1xf32>
    %cst_11 = arith.constant dense<0xFF800000> : vector<32x1xf32>
    %23 = vector.multi_reduction <maximumf>, %22, %cst_11 [1] : vector<32x8x1xf32> to vector<32x1xf32>
    %24 = vector.shape_cast %23 : vector<32x1xf32> to vector<32x1x1xf32>
    %25 = vector.broadcast %24 : vector<32x1x1xf32> to vector<32x8x1xf32>
    %26 = arith.subf %22, %25 : vector<32x8x1xf32>
    %27 = math.exp %26 : vector<32x8x1xf32>
    %cst_12 = arith.constant dense<0.000000e+00> : vector<32x1xf32>
    %28 = vector.multi_reduction <add>, %27, %cst_12 [1] : vector<32x8x1xf32> to vector<32x1xf32>
    %29 = vector.shape_cast %28 : vector<32x1xf32> to vector<32x1x1xf32>
    %30 = tpu.reciprocal %29 {approx = true} : vector<32x1x1xf32> -> vector<32x1x1xf32>
    %31 = vector.broadcast %30 : vector<32x1x1xf32> to vector<32x8x1xf32>
    %32 = arith.mulf %27, %31 : vector<32x8x1xf32>
    %33 = vector.broadcast %32 : vector<32x8x1xf32> to vector<32x8x128xf32>
    %34 = arith.mulf %33, %5 : vector<32x8x128xf32>
    %cst_13 = arith.constant dense<0.000000e+00> : vector<32x128xf32>
    %35 = vector.multi_reduction <add>, %34, %cst_13 [1] : vector<32x8x128xf32> to vector<32x128xf32>
    %c0_14 = arith.constant 0 : index
    %c0_15 = arith.constant 0 : index
    %36 = vector.load %arg4[%c0_14, %c0_15] : memref<32x128xf32, #tpu.memory_space<vmem>>, vector<32x128xf32>
    tpu.vector_store %arg4[%c0_14, %c0_15], %35 {strides = array<i32>} : memref<32x128xf32, #tpu.memory_space<vmem>>, vector<32x128xf32>,
    return
  }
  func.func @transform_0(%arg0: i32) -> (i32, i32) {
    %c0_i32 = arith.constant 0 : i32
    %c0_i32_0 = arith.constant 0 : i32
    return %arg0, %c0_i32 : i32, i32
  }
  func.func @transform_1(%arg0: i32) -> (i32, i32, i32) {
    %c0_i32 = arith.constant 0 : i32
    %c0_i32_0 = arith.constant 0 : i32
    %c0_i32_1 = arith.constant 0 : i32
    return %arg0, %c0_i32, %c0_i32_0 : i32, i32, i32
  }
  func.func @transform_2(%arg0: i32) -> (i32, i32) {
    %c0_i32 = arith.constant 0 : i32
    %c0_i32_0 = arith.constant 0 : i32
    %c0_i32_1 = arith.constant 0 : i32
    return %c0_i32, %c0_i32_0 : i32, i32
  }
  func.func @transform_3(%arg0: i32) -> (i32, i32) {
    %c0_i32 = arith.constant 0 : i32
    %c0_i32_0 = arith.constant 0 : i32
    return %arg0, %c0_i32 : i32, i32
  }
}

</mosaic_0001>

<llo_original>
// kernel: tpu_custom_call.1
$region0: #{tpu_custom_call.1}
  #allocation0 [shape = 'u32[]', space=smem, size = 0x4, offset = 0x4, fixed_abs, tag = 'smem constant byte address 0x4 - core index']
  #allocation1 [shape = 'u32[72,128]{1,0:T(1,128)}', space=vmem, size = 0x9000, scoped, tag = 'internal scratch']
  %s0 = inlined_call_operand.vmem [shape: f32[64,16], index: 0, kind: input, shape index: {}]
  %s1 = inlined_call_operand.hbm [shape: f32[64,8,128], index: 1, kind: input, shape index: {}]
  %s2 = inlined_call_operand.hbm [shape: f32[160,128], index: 2, kind: input, shape index: {}]
  %s3 = inlined_call_operand.hbm [shape: f32[64,128], index: 3, kind: output, shape index: {}]
  %s4 = sld [smem:[#allocation0]]
  $region53: #{tpu_custom_call.1} parent=0
    _
  %s6 = ssub.s32 1, %s4
  %s7 = scalar_select 0, %s6, %s4
  $region1: #{tpu_custom_call.1} parent=0
    #allocation2 [shape = 'u8[262144]{0}', space=vmem, size = 0x40000, scoped, tag = 'input window, operand 1']
    #allocation3 [shape = 's32[2]{0}', space=sflag, size = 0x8, scoped, tag = 'scoped memory for tpu_custom_call.1']
    #allocation4 [shape = 's32[2]{0}', space=sflag, size = 0x8, scoped, tag = 'scoped memory for tpu_custom_call.1']
    #allocation5 [shape = 'u8[81920]{0}', space=vmem, size = 0x14000, scoped, tag = 'input window, operand 2, single buffered']
    #allocation6 [shape = 's32[1]{0}', space=sflag, size = 0x4, scoped, tag = 'scoped memory for tpu_custom_call.1']
    #allocation7 [shape = 'u8[32768]{0}', space=vmem, size = 0x8000, scoped, tag = 'output window, operand 0']
    %8 = vsyncpa [#allocation3], 0
    %s9 = scalar_lea.sflag [#allocation3], 1
    %10 = vsyncpa %s9, 0
    %11 = vsyncpa [#allocation6], 0
    %12 = vsyncpa [#allocation4], 0
    %s13 = scalar_lea.sflag [#allocation4], 1
    %14 = vsyncpa %s13, 0
    loop: start=0, step=1, limit=4
    $region2: #{tpu_custom_call.1} parent=1 // loop_pre_header
      _
    $region3: #{tpu_custom_call.1} parent=1 // loop_header
      %s16 = sphi 0, %s20
      %p17 = scmp.ge.s32.totalorder %s16, 4
      %s26 = sphi 0, %s28
      %s29 = sphi 0, %s26
      %s30 = sphi 0, %s29
      %s46 = sphi 0, %s30
      %s52 = sphi 0, %s54
      %s55 = sphi 0, %s52
      %s56 = sphi 0, %s55
      %s72 = sphi 0, %s56
      %s76 = sphi 0, %s76
      %s78 = sphi 0, %s76
      %s79 = sphi 0, %s78
      %s93 = sphi 0, %s79
      %s99 = sphi 0, %s101
      %s102 = sphi 0, %s99
      %s103 = sphi 0, %s102
      %s119 = sphi 0, %s103
    $region4: #{tpu_custom_call.1} parent=1 // loop_header_branch
      %19 = sbr.rel (%p17) target = $region8
    $region5: #{tpu_custom_call.1} parent=1 // loop_body
      %s21 = ssub.s32 %s16, 1
      %s22 = ssub.s32 %s16, 2
      %s23 = sadd.s32 %s16, 1
      %s24 = ssub.s32 %s16, %s23
      %p25 = scmp.eq.s32.totalorder %s24, 0
      %s27 = sadd.s32 %s26, 1
      %s28 = scalar_select %p25, %s26, %s27
      %p31 = pneg %p25
      %p32 = scmp.eq.s32.totalorder %s16, 1
      %p33 = por %p31, %p32
      %p34 = scmp.ne.s32.totalorder %s26, %s29
      %p35 = scmp.eq.s32.totalorder %s16, 0
      %p36 = por %p34, %p35
      %p37 = scmp.ne.s32.totalorder %s26, %s29
      %p38 = scmp.eq.s32.totalorder %s21, 1
      %p39 = por %p37, %p38
      %p40 = scmp.ne.s32.totalorder %s29, %s30
      %p41 = scmp.eq.s32.totalorder %s21, 0
      %p42 = por %p40, %p41
      %p43 = scmp.ne.s32.totalorder %s29, %s30
      %p44 = scmp.eq.s32.totalorder %s22, 1
      %p45 = por %p43, %p44
      %p47 = scmp.ne.s32.totalorder %s30, %s46
      %p48 = scmp.eq.s32.totalorder %s22, 0
      %p49 = por %p47, %p48
      %s50 = ssub.s32 %s16, %s23
      %p51 = scmp.eq.s32.totalorder %s50, 0
      %s53 = sadd.s32 %s52, 1
      %s54 = scalar_select %p51, %s52, %s53
      %p57 = pneg %p51
      %p58 = scmp.eq.s32.totalorder %s16, 1
      %p59 = por %p57, %p58
      %p60 = scmp.ne.s32.totalorder %s52, %s55
      %p61 = scmp.eq.s32.totalorder %s16, 0
      %p62 = por %p60, %p61
      %p63 = scmp.ne.s32.totalorder %s52, %s55
      %p64 = scmp.eq.s32.totalorder %s21, 1
      %p65 = por %p63, %p64
      %p66 = scmp.ne.s32.totalorder %s55, %s56
      %p67 = scmp.eq.s32.totalorder %s21, 0
      %p68 = por %p66, %p67
      %p69 = scmp.ne.s32.totalorder %s55, %s56
      %p70 = scmp.eq.s32.totalorder %s22, 1
      %p71 = por %p69, %p70
      %p73 = scmp.ne.s32.totalorder %s56, %s72
      %p74 = scmp.eq.s32.totalorder %s22, 0
      %p75 = por %p73, %p74
      %s77 = sadd.s32 %s76, 1
      %p80 = scmp.eq.s32.totalorder %s16, 1
      %p81 = scmp.ne.s32.totalorder %s76, %s78
      %p82 = scmp.eq.s32.totalorder %s16, 0
      %p83 = por %p81, %p82
      %p84 = scmp.ne.s32.totalorder %s76, %s78
      %p85 = scmp.eq.s32.totalorder %s21, 1
      %p86 = por %p84, %p85
      %p87 = scmp.ne.s32.totalorder %s78, %s79
      %p88 = scmp.eq.s32.totalorder %s21, 0
      %p89 = por %p87, %p88
      %p90 = scmp.ne.s32.totalorder %s78, %s79
      %p91 = scmp.eq.s32.totalorder %s22, 1
      %p92 = por %p90, %p91
      %p94 = scmp.ne.s32.totalorder %s79, %s93
      %p95 = scmp.eq.s32.totalorder %s22, 0
      %p96 = por %p94, %p95
      %s97 = ssub.s32 %s16, %s23
      %p98 = scmp.eq.s32.totalorder %s97, 0
      %s100 = sadd.s32 %s99, 1
      %s101 = scalar_select %p98, %s99, %s100
      %p104 = pneg %p98
      %p105 = scmp.eq.s32.totalorder %s16, 1
      %p106 = por %p104, %p105
      %p107 = scmp.ne.s32.totalorder %s99, %s102
      %p108 = scmp.eq.s32.totalorder %s16, 0
      %p109 = por %p107, %p108
      %p110 = scmp.ne.s32.totalorder %s99, %s102
      %p111 = scmp.eq.s32.totalorder %s21, 1
      %p112 = por %p110, %p111
      %p113 = scmp.ne.s32.totalorder %s102, %s103
      %p114 = scmp.eq.s32.totalorder %s21, 0
      %p115 = por %p113, %p114
      %p116 = scmp.ne.s32.totalorder %s102, %s103
      %p117 = scmp.eq.s32.totalorder %s22, 1
      %p118 = por %p116, %p117
      %p120 = scmp.ne.s32.totalorder %s103, %s119
      %p121 = scmp.eq.s32.totalorder %s22, 0
      %p122 = por %p120, %p121
      %p123 = scmp.le.s32.totalorder 1, %s16
      %p124 = scmp.lt.s32.totalorder %s16, 3
      %p125 = pnand %p123, %p124
      %p126 = pneg %p125
      // Predicated region
      $region9: #{tpu_custom_call.1} parent=5 // pred_check
        _
      $region10: #{tpu_custom_call.1} parent=5 // pred_check_branch
        %128 = sbr.rel (%p125) target = $region12
      $region11: #{tpu_custom_call.1} parent=5 // pred_region
        %s129 = ssub.s32 %s16, 1
        // Predicated region
        $region13: #{tpu_custom_call.1} parent=11 // pred_check
          %p130 = pneg %p89
        $region14: #{tpu_custom_call.1} parent=11 // pred_check_branch
          %132 = sbr.rel (%p130) target = $region16
        $region15: #{tpu_custom_call.1} parent=11 // pred_region
          %134 = vsyncadd [#allocation6], 0
          %s135 = sshll.u32 %s2, 4
          %s136 = int_to_ptr.hbm [resolvable:$true] %s135
          %s137 = sshll.u32 [#allocation5], 4
          %s138 = int_to_ptr.vmem [resolvable:$true] %s137
          %143 = dma.hbm_to_vmem [thread:$0]  %s136, 2560, %s138, [#allocation6], 128, 128, 8
        $region16: #{tpu_custom_call.1} parent=11 // pred_fallthru
          _
      $region12: #{tpu_custom_call.1} parent=5 // pred_fallthru
        _
      %p144 = scmp.lt.s32.totalorder %s16, 2
      // Predicated region
      $region17: #{tpu_custom_call.1} parent=5 // pred_check
        %p145 = pneg %p144
      $region18: #{tpu_custom_call.1} parent=5 // pred_check_branch
        %147 = sbr.rel (%p145) target = $region20
      $region19: #{tpu_custom_call.1} parent=5 // pred_region
        // Predicated region
        $region21: #{tpu_custom_call.1} parent=19 // pred_check
          %p148 = pneg %p36
        $region22: #{tpu_custom_call.1} parent=19 // pred_check_branch
          %150 = sbr.rel (%p148) target = $region24
        $region23: #{tpu_custom_call.1} parent=19 // pred_region
          %s151 = smul.u32 4, %s16
          %p152 = scmp.lt.s32.totalorder %s151, 7
          %s153 = scalar_select %p152, %s151, 7
          %s154 = smul.addr %s153, 8
          %s155 = scalar_lea.vmem %s0, %s154
          %s156 = smul.u32 4, %s16
        $region24: #{tpu_custom_call.1} parent=19 // pred_fallthru
          _
        // Predicated region
        $region25: #{tpu_custom_call.1} parent=19 // pred_check
          %p157 = pneg %p62
        $region26: #{tpu_custom_call.1} parent=19 // pred_check_branch
          %159 = sbr.rel (%p157) target = $region28
        $region27: #{tpu_custom_call.1} parent=19 // pred_region
          %s160 = sand.u32 %s52, 1
          %s161 = scalar_lea.sflag [#allocation3], %s160
          %s162 = sand.u32 %s52, 1
          %s163 = smul.addr %s162, 256
          %s164 = scalar_lea.vmem [#allocation2], %s163
          %s165 = smul.u32 32, %s16
          %167 = vsyncadd %s161, 0
          %s168 = smul.addr %s165, 8
          %s169 = scalar_lea.hbm %s1, %s168
          %s170 = sshll.u32 %s169, 4
          %s171 = int_to_ptr.hbm [resolvable:$true] %s170
          %s172 = sshll.u32 %s164, 4
          %s173 = int_to_ptr.vmem [resolvable:$true] %s172
          %178 = dma.hbm_to_vmem [thread:$0]  %s171, 4096, %s173, %s161, 128, 128, 8
        $region28: #{tpu_custom_call.1} parent=19 // pred_fallthru
          _
      $region20: #{tpu_custom_call.1} parent=5 // pred_fallthru
        _
      %p179 = scmp.le.s32.totalorder 1, %s16
      %p180 = scmp.lt.s32.totalorder %s16, 3
      %p181 = pnand %p179, %p180
      %p182 = pneg %p181
      // Predicated region
      $region29: #{tpu_custom_call.1} parent=5 // pred_check
        _
      $region30: #{tpu_custom_call.1} parent=5 // pred_check_branch
        %184 = sbr.rel (%p181) target = $region32
      $region31: #{tpu_custom_call.1} parent=5 // pred_region
        %s185 = ssub.s32 %s16, 1
        %s186 = sand.u32 %s55, 1
        %s187 = scalar_lea.sflag [#allocation3], %s186
        %s188 = sand.u32 %s55, 1
        %s189 = smul.addr %s188, 256
        %s190 = scalar_lea.vmem [#allocation2], %s189
        // Predicated region
        $region33: #{tpu_custom_call.1} parent=31 // pred_check
          %p191 = pneg %p68
        $region34: #{tpu_custom_call.1} parent=31 // pred_check_branch
          %193 = sbr.rel (%p191) target = $region36
        $region35: #{tpu_custom_call.1} parent=31 // pred_region
          %195 = dma.done %s187, 4096
        $region36: #{tpu_custom_call.1} parent=31 // pred_fallthru
          _
        // Predicated region
        $region37: #{tpu_custom_call.1} parent=31 // pred_check
          %p196 = pneg %p89
        $region38: #{tpu_custom_call.1} parent=31 // pred_check_branch
          %198 = sbr.rel (%p196) target = $region40
        $region39: #{tpu_custom_call.1} parent=31 // pred_region
          %200 = dma.done [#allocation6], 2560
        $region40: #{tpu_custom_call.1} parent=31 // pred_fallthru
          _
        %s201 = smul.u32 4, %s21
        %p202 = scmp.lt.s32.totalorder %s201, 7
        %s203 = scalar_select %p202, %s201, 7
        %s204 = smul.addr %s203, 8
        %s205 = scalar_lea.vmem %s0, %s204
        %p206 = pneg %p42
        %p207 = pneg %p39
        %s208 = sand.u32 %s55, 1
        %s209 = scalar_lea.sflag [#allocation3], %s208
        %s210 = sand.u32 %s55, 1
        %s211 = smul.addr %s210, 256
        %s212 = scalar_lea.vmem [#allocation2], %s211
        %p213 = pneg %p68
        %p214 = pneg %p65
        %p215 = pneg %p89
        %p216 = pneg %p86
        %p217 = pneg %p115
        %p218 = pneg %p112
        %s219 = sand.u32 %s102, 1
        %s220 = scalar_lea.sflag [#allocation4], %s219
        %s221 = sand.u32 %s102, 1
        %s222 = smul.addr %s221, 32
        %s223 = scalar_lea.vmem [#allocation7], %s222
        %s224 = smul.u32 4, %s21
        %p225 = scmp.lt.s32.totalorder %s224, 7
        %s226 = scalar_select %p225, %s224, 7
        %s227 = smul.addr %s226, 8
        %s228 = scalar_lea.vmem %s0, %s227
        %s229 = smul.u32 4, %s21
        %s230 = smul.u32 32, %s21
        %s231 = smul.u32 4, %s21
        %v232 = vld [vmem:[#allocation5] sm:$0xff]
        %v233 = vld [vmem:[#allocation5 + $0x8] sm:$0xff]
        %v234 = vld [vmem:[#allocation5 + $0x10] sm:$0x1]
        %v235 = vld [vmem:[#allocation5 + $0x18] sm:$0xff]
        %v236 = vld [vmem:[#allocation5 + $0x20] sm:$0xff]
        %v237 = vld [vmem:[#allocation5 + $0x28] sm:$0xff]
        %v238 = vld [vmem:[#allocation5 + $0x30] sm:$0xff]
        %v239 = vld [vmem:[#allocation5 + $0x38] sm:$0xff]
        %v240 = vld [vmem:[#allocation5 + $0x40] sm:$0xff]
        %v241 = vld [vmem:[#allocation5 + $0x48] sm:$0xff]
        %v242 = vld [vmem:[#allocation5 + $0x50] sm:$0xff]
        %v243 = vld [vmem:[#allocation5 + $0x58] sm:$0xff]
        %v244 = vld [vmem:[#allocation5 + $0x60] sm:$0xff]
        %v245 = vld [vmem:[#allocation5 + $0x68] sm:$0xff]
        %v246 = vld [vmem:[#allocation5 + $0x70] sm:$0xff]
        %v247 = vld [vmem:[#allocation5 + $0x78] sm:$0xff]
        %v248 = vld [vmem:[#allocation5 + $0x80] sm:$0xff]
        %v249 = vld [vmem:[#allocation5 + $0x88] sm:$0xff]
        %v250 = vld [vmem:[#allocation5 + $0x90] sm:$0xff]
        %v251 = vld [vmem:[#allocation5 + $0x98] sm:$0x1]
        %v252 = vld [vmem:[%s228] sm:$0xff]
        %v253 = vld [vmem:[%s228 + $0x8] sm:$0xff]
        %v254 = vld [vmem:[%s228 + $0x10] sm:$0xff]
        %v255 = vld [vmem:[%s228 + $0x18] sm:$0xff]
        %v256 = vld [vmem:[%s190] sm:$0xff]
        %v257 = vld [vmem:[%s190 + $0x8] sm:$0xff]
        %v258 = vld [vmem:[%s190 + $0x10] sm:$0xff]
        %v259 = vld [vmem:[%s190 + $0x18] sm:$0xff]
        %v260 = vld [vmem:[%s190 + $0x20] sm:$0xff]
        %v261 = vld [vmem:[%s190 + $0x28] sm:$0xff]
        %v262 = vld [vmem:[%s190 + $0x30] sm:$0xff]
        %v263 = vld [vmem:[%s190 + $0x38] sm:$0xff]
        %v264 = vld [vmem:[%s190 + $0x40] sm:$0xff]
        %v265 = vld [vmem:[%s190 + $0x48] sm:$0xff]
        %v266 = vld [vmem:[%s190 + $0x50] sm:$0xff]
        %v267 = vld [vmem:[%s190 + $0x58] sm:$0xff]
        %v268 = vld [vmem:[%s190 + $0x60] sm:$0xff]
        %v269 = vld [vmem:[%s190 + $0x68] sm:$0xff]
        %v270 = vld [vmem:[%s190 + $0x70] sm:$0xff]
        %v271 = vld [vmem:[%s190 + $0x78] sm:$0xff]
        %v272 = vld [vmem:[%s190 + $0x80] sm:$0xff]
        %v273 = vld [vmem:[%s190 + $0x88] sm:$0xff]
        %v274 = vld [vmem:[%s190 + $0x90] sm:$0xff]
        %v275 = vld [vmem:[%s190 + $0x98] sm:$0xff]
        %v276 = vld [vmem:[%s190 + $0xa0] sm:$0xff]
        %v277 = vld [vmem:[%s190 + $0xa8] sm:$0xff]
        %v278 = vld [vmem:[%s190 + $0xb0] sm:$0xff]
        %v279 = vld [vmem:[%s190 + $0xb8] sm:$0xff]
        %v280 = vld [vmem:[%s190 + $0xc0] sm:$0xff]
        %v281 = vld [vmem:[%s190 + $0xc8] sm:$0xff]
        %v282 = vld [vmem:[%s190 + $0xd0] sm:$0xff]
        %v283 = vld [vmem:[%s190 + $0xd8] sm:$0xff]
        %v284 = vld [vmem:[%s190 + $0xe0] sm:$0xff]
        %v285 = vld [vmem:[%s190 + $0xe8] sm:$0xff]
        %v286 = vld [vmem:[%s190 + $0xf0] sm:$0xff]
        %v287 = vld [vmem:[%s190 + $0xf8] sm:$0xff]
        %v288 = vperm.slane %v234, 0
        %vm289 = vcmask 130048
        %v291 = vsel %vm289, %v252, 0
        %v294 = vsel %vm289, %v253, 0
        %v297 = vsel %vm289, %v254, 0
        %v300 = vsel %vm289, %v255, 0
        %302 = vmatpush.msra.mxu0 0.0
        %303 = vmatpush.msra.mxu0 0.0
        %304 = vmatpush.msra.mxu0 0.0
        %305 = vmatpush.msra.mxu0 0.0
        %306 = vmatpush.msra.mxu0 0.0
        %307 = vmatpush.msra.mxu0 0.0
        %308 = vmatpush.msra.mxu0 0.0
        %309 = vmatpush.msra.mxu0 0.0
        %310 = vmatpush.msra.mxu0 0.0
        %311 = vmatpush.msra.mxu0 0.0
        %312 = vmatpush.msra.mxu0 0.0
        %313 = vmatpush.msra.mxu0 0.0
        %314 = vmatpush.msra.mxu0 0.0
        %315 = vmatpush.msra.mxu0 0.0
        %316 = vmatpush.msra.mxu0 %v233
        %317 = vmatpush.msra.mxu0 %v232
        %318 = vmatmul.f32.gmra.mxu0 %v291
        %v319 = vpop.f32.mrf.mxu0
        %v320 = vadd.f32 %v288, %v319
        %321 = vmatmul.f32.gmra.mxu0 %v294
        %v322 = vpop.f32.mrf.mxu0
        %v323 = vadd.f32 %v288, %v322
        %324 = vmatmul.f32.gmra.mxu0 %v297
        %v325 = vpop.f32.mrf.mxu0
        %v326 = vadd.f32 %v288, %v325
        %327 = vmatmul.f32.gmra.mxu0 %v300
        %v328 = vpop.f32.mrf.mxu0
        %v329 = vadd.f32 %v288, %v328
        %330 = vdwg.mxu0
        %v331 = vpack.c.bf16 %v257, %v256
        %v332 = vpack.c.bf16 %v259, %v258
        %v333 = vpack.c.bf16 %v261, %v260
        %v334 = vpack.c.bf16 %v263, %v262
        %v335 = vpack.c.bf16 %v265, %v264
        %v336 = vpack.c.bf16 %v267, %v266
        %v337 = vpack.c.bf16 %v269, %v268
        %v338 = vpack.c.bf16 %v271, %v270
        %v339 = vpack.c.bf16 %v273, %v272
        %v340 = vpack.c.bf16 %v275, %v274
        %v341 = vpack.c.bf16 %v277, %v276
        %v342 = vpack.c.bf16 %v279, %v278
        %v343 = vpack.c.bf16 %v281, %v280
        %v344 = vpack.c.bf16 %v283, %v282
        %v345 = vpack.c.bf16 %v285, %v284
        %v346 = vpack.c.bf16 %v287, %v286
        %v347 = vpack.c.bf16 %v236, %v235
        %v348 = vpack.c.bf16 %v238, %v237
        %v349 = vpack.c.bf16 %v240, %v239
        %v350 = vpack.c.bf16 %v242, %v241
        %v351 = vpack.c.bf16 %v244, %v243
        %v352 = vpack.c.bf16 %v246, %v245
        %v353 = vpack.c.bf16 %v248, %v247
        %v354 = vpack.c.bf16 %v250, %v249
        %355 = vmatpush.bf16.msra.mxu0 %v354
        %356 = vmatpush.bf16.msra.mxu0 %v353
        %357 = vmatpush.bf16.msra.mxu0 %v352
        %358 = vmatpush.bf16.msra.mxu0 %v351
        %359 = vmatpush.bf16.msra.mxu0 %v350
        %360 = vmatpush.bf16.msra.mxu0 %v349
        %361 = vmatpush.bf16.msra.mxu0 %v348
        %362 = vmatpush.bf16.msra.mxu0 %v347
        %363 = vmatmul.bf16.gmra.mxu0 %v331
        %v364 = vpop.f32.mrf.mxu0
        %v365 = vadd.f32 0.0, %v364
        %v366 = vpop.f32.mrf.mxu0
        %v367 = vadd.f32 0.0, %v366
        %368 = vmatmul.bf16.gmra.mxu0 %v332
        %v369 = vpop.f32.mrf.mxu0
        %v370 = vadd.f32 0.0, %v369
        %v371 = vpop.f32.mrf.mxu0
        %v372 = vadd.f32 0.0, %v371
        %373 = vmatmul.bf16.gmra.mxu0 %v333
        %v374 = vpop.f32.mrf.mxu0
        %v375 = vadd.f32 0.0, %v374
        %v376 = vpop.f32.mrf.mxu0
        %v377 = vadd.f32 0.0, %v376
        %378 = vmatmul.bf16.gmra.mxu0 %v334
        %v379 = vpop.f32.mrf.mxu0
        %v380 = vadd.f32 0.0, %v379
        %v381 = vpop.f32.mrf.mxu0
        %v382 = vadd.f32 0.0, %v381
        %383 = vmatmul.bf16.gmra.mxu0 %v335
        %v384 = vpop.f32.mrf.mxu0
        %v385 = vadd.f32 0.0, %v384
        %v386 = vpop.f32.mrf.mxu0
        %v387 = vadd.f32 0.0, %v386
        %388 = vmatmul.bf16.gmra.mxu0 %v336
        %v389 = vpop.f32.mrf.mxu0
        %v390 = vadd.f32 0.0, %v389
        %v391 = vpop.f32.mrf.mxu0
        %v392 = vadd.f32 0.0, %v391
        %393 = vmatmul.bf16.gmra.mxu0 %v337
        %v394 = vpop.f32.mrf.mxu0
        %v395 = vadd.f32 0.0, %v394
        %v396 = vpop.f32.mrf.mxu0
        %v397 = vadd.f32 0.0, %v396
        %398 = vmatmul.bf16.gmra.mxu0 %v338
        %v399 = vpop.f32.mrf.mxu0
        %v400 = vadd.f32 0.0, %v399
        %v401 = vpop.f32.mrf.mxu0
        %v402 = vadd.f32 0.0, %v401
        %403 = vmatmul.bf16.gmra.mxu0 %v339
        %v404 = vpop.f32.mrf.mxu0
        %v405 = vadd.f32 0.0, %v404
        %v406 = vpop.f32.mrf.mxu0
        %v407 = vadd.f32 0.0, %v406
        %408 = vmatmul.bf16.gmra.mxu0 %v340
        %v409 = vpop.f32.mrf.mxu0
        %v410 = vadd.f32 0.0, %v409
        %v411 = vpop.f32.mrf.mxu0
        %v412 = vadd.f32 0.0, %v411
        %413 = vmatmul.bf16.gmra.mxu0 %v341
        %v414 = vpop.f32.mrf.mxu0
        %v415 = vadd.f32 0.0, %v414
        %v416 = vpop.f32.mrf.mxu0
        %v417 = vadd.f32 0.0, %v416
        %418 = vmatmul.bf16.gmra.mxu0 %v342
        %v419 = vpop.f32.mrf.mxu0
        %v420 = vadd.f32 0.0, %v419
        %v421 = vpop.f32.mrf.mxu0
        %v422 = vadd.f32 0.0, %v421
        %423 = vmatmul.bf16.gmra.mxu0 %v343
        %v424 = vpop.f32.mrf.mxu0
        %v425 = vadd.f32 0.0, %v424
        %v426 = vpop.f32.mrf.mxu0
        %v427 = vadd.f32 0.0, %v426
        %428 = vmatmul.bf16.gmra.mxu0 %v344
        %v429 = vpop.f32.mrf.mxu0
        %v430 = vadd.f32 0.0, %v429
        %v431 = vpop.f32.mrf.mxu0
        %v432 = vadd.f32 0.0, %v431
        %433 = vmatmul.bf16.gmra.mxu0 %v345
        %v434 = vpop.f32.mrf.mxu0
        %v435 = vadd.f32 0.0, %v434
        %v436 = vpop.f32.mrf.mxu0
        %v437 = vadd.f32 0.0, %v436
        %438 = vmatmul.bf16.gmra.mxu0 %v346
        %v439 = vpop.f32.mrf.mxu0
        %v440 = vadd.f32 0.0, %v439
        %v441 = vpop.f32.mrf.mxu0
        %v442 = vadd.f32 0.0, %v441
        %443 = vdwg.mxu0
        %v448 = vrot.slane %v320, 1
        %v449 = vrot.slane %v320, 2
        %v450 = vrot.slane %v320, 3
        %v451 = vrot.slane %v320, 4
        %v452 = vrot.slane %v320, 5
        %v453 = vrot.slane %v320, 6
        %v454 = vrot.slane %v320, 7
        %v455 = vrot.slane %v323, 1
        %v456 = vrot.slane %v323, 2
        %v457 = vrot.slane %v323, 3
        %v458 = vrot.slane %v323, 4
        %v459 = vrot.slane %v323, 5
        %v460 = vrot.slane %v323, 6
        %v461 = vrot.slane %v323, 7
        %v462 = vrot.slane %v326, 1
        %v463 = vrot.slane %v326, 2
        %v464 = vrot.slane %v326, 3
        %v465 = vrot.slane %v326, 4
        %v466 = vrot.slane %v326, 5
        %v467 = vrot.slane %v326, 6
        %v468 = vrot.slane %v326, 7
        %v469 = vrot.slane %v329, 1
        %v470 = vrot.slane %v329, 2
        %v471 = vrot.slane %v329, 3
        %v472 = vrot.slane %v329, 4
        %v473 = vrot.slane %v329, 5
        %v474 = vrot.slane %v329, 6
        %v475 = vrot.slane %v329, 7
        %v476 = vperm.slane %v320, 0
        %v477 = vperm.slane %v448, 0
        %v478 = vperm.slane %v449, 0
        %v479 = vperm.slane %v450, 0
        %v480 = vperm.slane %v451, 0
        %v481 = vperm.slane %v452, 0
        %v482 = vperm.slane %v453, 0
        %v483 = vperm.slane %v454, 0
        %v484 = vperm.slane %v323, 0
        %v485 = vperm.slane %v455, 0
        %v486 = vperm.slane %v456, 0
        %v487 = vperm.slane %v457, 0
        %v488 = vperm.slane %v458, 0
        %v489 = vperm.slane %v459, 0
        %v490 = vperm.slane %v460, 0
        %v491 = vperm.slane %v461, 0
        %v492 = vperm.slane %v326, 0
        %v493 = vperm.slane %v462, 0
        %v494 = vperm.slane %v463, 0
        %v495 = vperm.slane %v464, 0
        %v496 = vperm.slane %v465, 0
        %v497 = vperm.slane %v466, 0
        %v498 = vperm.slane %v467, 0
        %v499 = vperm.slane %v468, 0
        %v500 = vperm.slane %v329, 0
        %v501 = vperm.slane %v469, 0
        %v502 = vperm.slane %v470, 0
        %v503 = vperm.slane %v471, 0
        %v504 = vperm.slane %v472, 0
        %v505 = vperm.slane %v473, 0
        %v506 = vperm.slane %v474, 0
        %v507 = vperm.slane %v475, 0
        %v540 = vadd.f32 %v476, %v365
        %v541 = vadd.f32 %v477, %v367
        %v542 = vadd.f32 %v478, %v370
        %v543 = vadd.f32 %v479, %v372
        %v544 = vadd.f32 %v480, %v375
        %v545 = vadd.f32 %v481, %v377
        %v546 = vadd.f32 %v482, %v380
        %v547 = vadd.f32 %v483, %v382
        %v548 = vadd.f32 %v484, %v385
        %v549 = vadd.f32 %v485, %v387
        %v550 = vadd.f32 %v486, %v390
        %v551 = vadd.f32 %v487, %v392
        %v552 = vadd.f32 %v488, %v395
        %v553 = vadd.f32 %v489, %v397
        %v554 = vadd.f32 %v490, %v400
        %v555 = vadd.f32 %v491, %v402
        %v556 = vadd.f32 %v492, %v405
        %v557 = vadd.f32 %v493, %v407
        %v558 = vadd.f32 %v494, %v410
        %v559 = vadd.f32 %v495, %v412
        %v560 = vadd.f32 %v496, %v415
        %v561 = vadd.f32 %v497, %v417
        %v562 = vadd.f32 %v498, %v420
        %v563 = vadd.f32 %v499, %v422
        %v564 = vadd.f32 %v500, %v425
        %v565 = vadd.f32 %v501, %v427
        %v566 = vadd.f32 %v502, %v430
        %v567 = vadd.f32 %v503, %v432
        %v568 = vadd.f32 %v504, %v435
        %v569 = vadd.f32 %v505, %v437
        %v570 = vadd.f32 %v506, %v440
        %v571 = vadd.f32 %v507, %v442
        %v572 = vtanh.pop %v540
        %v573 = vtanh.pop %v541
        %v574 = vtanh.pop %v542
        %v575 = vtanh.pop %v543
        %v576 = vtanh.pop %v544
        %v577 = vtanh.pop %v545
        %v578 = vtanh.pop %v546
        %v579 = vtanh.pop %v547
        %v580 = vtanh.pop %v548
        %v581 = vtanh.pop %v549
        %v582 = vtanh.pop %v550
        %v583 = vtanh.pop %v551
        %v584 = vtanh.pop %v552
        %v585 = vtanh.pop %v553
        %v586 = vtanh.pop %v554
        %v587 = vtanh.pop %v555
        %v588 = vtanh.pop %v556
        %v589 = vtanh.pop %v557
        %v590 = vtanh.pop %v558
        %v591 = vtanh.pop %v559
        %v592 = vtanh.pop %v560
        %v593 = vtanh.pop %v561
        %v594 = vtanh.pop %v562
        %v595 = vtanh.pop %v563
        %v596 = vtanh.pop %v564
        %v597 = vtanh.pop %v565
        %v598 = vtanh.pop %v566
        %v599 = vtanh.pop %v567
        %v600 = vtanh.pop %v568
        %v601 = vtanh.pop %v569
        %v602 = vtanh.pop %v570
        %v603 = vtanh.pop %v571
        %v604 = vperm.slane %v251, 0
        %v605 = vmul.f32 %v572, %v604
        %v606 = vmul.f32 %v573, %v604
        %v607 = vmul.f32 %v574, %v604
        %v608 = vmul.f32 %v575, %v604
        %v609 = vmul.f32 %v576, %v604
        %v610 = vmul.f32 %v577, %v604
        %v611 = vmul.f32 %v578, %v604
        %v612 = vmul.f32 %v579, %v604
        %v613 = vmul.f32 %v580, %v604
        %v614 = vmul.f32 %v581, %v604
        %v615 = vmul.f32 %v582, %v604
        %v616 = vmul.f32 %v583, %v604
        %v617 = vmul.f32 %v584, %v604
        %v618 = vmul.f32 %v585, %v604
        %v619 = vmul.f32 %v586, %v604
        %v620 = vmul.f32 %v587, %v604
        %v621 = vmul.f32 %v588, %v604
        %v622 = vmul.f32 %v589, %v604
        %v623 = vmul.f32 %v590, %v604
        %v624 = vmul.f32 %v591, %v604
        %v625 = vmul.f32 %v592, %v604
        %v626 = vmul.f32 %v593, %v604
        %v627 = vmul.f32 %v594, %v604
        %v628 = vmul.f32 %v595, %v604
        %v629 = vmul.f32 %v596, %v604
        %v630 = vmul.f32 %v597, %v604
        %v631 = vmul.f32 %v598, %v604
        %v632 = vmul.f32 %v599, %v604
        %v633 = vmul.f32 %v600, %v604
        %v634 = vmul.f32 %v601, %v604
        %v635 = vmul.f32 %v602, %v604
        %v636 = vmul.f32 %v603, %v604
        %637 = vadd.xlane.f32.xlu0 %v605
        %v638 = vpop.xlane.xlu0 %637
        %639 = vadd.xlane.f32.xlu0 %v606
        %v640 = vpop.xlane.xlu0 %639
        %641 = vadd.xlane.f32.xlu0 %v607
        %v642 = vpop.xlane.xlu0 %641
        %643 = vadd.xlane.f32.xlu0 %v608
        %v644 = vpop.xlane.xlu0 %643
        %645 = vadd.xlane.f32.xlu0 %v609
        %v646 = vpop.xlane.xlu0 %645
        %647 = vadd.xlane.f32.xlu0 %v610
        %v648 = vpop.xlane.xlu0 %647
        %649 = vadd.xlane.f32.xlu0 %v611
        %v650 = vpop.xlane.xlu0 %649
        %651 = vadd.xlane.f32.xlu0 %v612
        %v652 = vpop.xlane.xlu0 %651
        %653 = vadd.xlane.f32.xlu0 %v613
        %v654 = vpop.xlane.xlu0 %653
        %655 = vadd.xlane.f32.xlu0 %v614
        %v656 = vpop.xlane.xlu0 %655
        %657 = vadd.xlane.f32.xlu0 %v615
        %v658 = vpop.xlane.xlu0 %657
        %659 = vadd.xlane.f32.xlu0 %v616
        %v660 = vpop.xlane.xlu0 %659
        %661 = vadd.xlane.f32.xlu0 %v617
        %v662 = vpop.xlane.xlu0 %661
        %663 = vadd.xlane.f32.xlu0 %v618
        %v664 = vpop.xlane.xlu0 %663
        %665 = vadd.xlane.f32.xlu0 %v619
        %v666 = vpop.xlane.xlu0 %665
        %667 = vadd.xlane.f32.xlu0 %v620
        %v668 = vpop.xlane.xlu0 %667
        %669 = vadd.xlane.f32.xlu0 %v621
        %v670 = vpop.xlane.xlu0 %669
        %671 = vadd.xlane.f32.xlu0 %v622
        %v672 = vpop.xlane.xlu0 %671
        %673 = vadd.xlane.f32.xlu0 %v623
        %v674 = vpop.xlane.xlu0 %673
        %675 = vadd.xlane.f32.xlu0 %v624
        %v676 = vpop.xlane.xlu0 %675
        %677 = vadd.xlane.f32.xlu0 %v625
        %v678 = vpop.xlane.xlu0 %677
        %679 = vadd.xlane.f32.xlu0 %v626
        %v680 = vpop.xlane.xlu0 %679
        %681 = vadd.xlane.f32.xlu0 %v627
        %v682 = vpop.xlane.xlu0 %681
        %683 = vadd.xlane.f32.xlu0 %v628
        %v684 = vpop.xlane.xlu0 %683
        %685 = vadd.xlane.f32.xlu0 %v629
        %v686 = vpop.xlane.xlu0 %685
        %687 = vadd.xlane.f32.xlu0 %v630
        %v688 = vpop.xlane.xlu0 %687
        %689 = vadd.xlane.f32.xlu0 %v631
        %v690 = vpop.xlane.xlu0 %689
        %691 = vadd.xlane.f32.xlu0 %v632
        %v692 = vpop.xlane.xlu0 %691
        %693 = vadd.xlane.f32.xlu0 %v633
        %v694 = vpop.xlane.xlu0 %693
        %695 = vadd.xlane.f32.xlu0 %v634
        %v696 = vpop.xlane.xlu0 %695
        %697 = vadd.xlane.f32.xlu0 %v635
        %v698 = vpop.xlane.xlu0 %697
        %699 = vadd.xlane.f32.xlu0 %v636
        %v700 = vpop.xlane.xlu0 %699
        %v701 = vrot.slane %v638, 4
        %v702 = vmax.f32 %v638, %v701
        %v703 = vrot.slane %v702, 2
        %v704 = vmax.f32 %v702, %v703
        %v705 = vrot.slane %v704, 1
        %v706 = vmax.f32 %v704, %v705
        %v707 = vrot.slane %v640, 4
        %v708 = vmax.f32 %v640, %v707
        %v709 = vrot.slane %v708, 2
        %v710 = vmax.f32 %v708, %v709
        %v711 = vrot.slane %v710, 1
        %v712 = vmax.f32 %v710, %v711
        %v713 = vrot.slane %v642, 4
        %v714 = vmax.f32 %v642, %v713
        %v715 = vrot.slane %v714, 2
        %v716 = vmax.f32 %v714, %v715
        %v717 = vrot.slane %v716, 1
        %v718 = vmax.f32 %v716, %v717
        %v719 = vrot.slane %v644, 4
        %v720 = vmax.f32 %v644, %v719
        %v721 = vrot.slane %v720, 2
        %v722 = vmax.f32 %v720, %v721
        %v723 = vrot.slane %v722, 1
        %v724 = vmax.f32 %v722, %v723
        %v725 = vrot.slane %v646, 4
        %v726 = vmax.f32 %v646, %v725
        %v727 = vrot.slane %v726, 2
        %v728 = vmax.f32 %v726, %v727
        %v729 = vrot.slane %v728, 1
        %v730 = vmax.f32 %v728, %v729
        %v731 = vrot.slane %v648, 4
        %v732 = vmax.f32 %v648, %v731
        %v733 = vrot.slane %v732, 2
        %v734 = vmax.f32 %v732, %v733
        %v735 = vrot.slane %v734, 1
        %v736 = vmax.f32 %v734, %v735
        %v737 = vrot.slane %v650, 4
        %v738 = vmax.f32 %v650, %v737
        %v739 = vrot.slane %v738, 2
        %v740 = vmax.f32 %v738, %v739
        %v741 = vrot.slane %v740, 1
        %v742 = vmax.f32 %v740, %v741
        %v743 = vrot.slane %v652, 4
        %v744 = vmax.f32 %v652, %v743
        %v745 = vrot.slane %v744, 2
        %v746 = vmax.f32 %v744, %v745
        %v747 = vrot.slane %v746, 1
        %v748 = vmax.f32 %v746, %v747
        %v749 = vrot.slane %v654, 4
        %v750 = vmax.f32 %v654, %v749
        %v751 = vrot.slane %v750, 2
        %v752 = vmax.f32 %v750, %v751
        %v753 = vrot.slane %v752, 1
        %v754 = vmax.f32 %v752, %v753
        %v755 = vrot.slane %v656, 4
        %v756 = vmax.f32 %v656, %v755
        %v757 = vrot.slane %v756, 2
        %v758 = vmax.f32 %v756, %v757
        %v759 = vrot.slane %v758, 1
        %v760 = vmax.f32 %v758, %v759
        %v761 = vrot.slane %v658, 4
        %v762 = vmax.f32 %v658, %v761
        %v763 = vrot.slane %v762, 2
        %v764 = vmax.f32 %v762, %v763
        %v765 = vrot.slane %v764, 1
        %v766 = vmax.f32 %v764, %v765
        %v767 = vrot.slane %v660, 4
        %v768 = vmax.f32 %v660, %v767
        %v769 = vrot.slane %v768, 2
        %v770 = vmax.f32 %v768, %v769
        %v771 = vrot.slane %v770, 1
        %v772 = vmax.f32 %v770, %v771
        %v773 = vrot.slane %v662, 4
        %v774 = vmax.f32 %v662, %v773
        %v775 = vrot.slane %v774, 2
        %v776 = vmax.f32 %v774, %v775
        %v777 = vrot.slane %v776, 1
        %v778 = vmax.f32 %v776, %v777
        %v779 = vrot.slane %v664, 4
        %v780 = vmax.f32 %v664, %v779
        %v781 = vrot.slane %v780, 2
        %v782 = vmax.f32 %v780, %v781
        %v783 = vrot.slane %v782, 1
        %v784 = vmax.f32 %v782, %v783
        %v785 = vrot.slane %v666, 4
        %v786 = vmax.f32 %v666, %v785
        %v787 = vrot.slane %v786, 2
        %v788 = vmax.f32 %v786, %v787
        %v789 = vrot.slane %v788, 1
        %v790 = vmax.f32 %v788, %v789
        %v791 = vrot.slane %v668, 4
        %v792 = vmax.f32 %v668, %v791
        %v793 = vrot.slane %v792, 2
        %v794 = vmax.f32 %v792, %v793
        %v795 = vrot.slane %v794, 1
        %v796 = vmax.f32 %v794, %v795
        %v797 = vrot.slane %v670, 4
        %v798 = vmax.f32 %v670, %v797
        %v799 = vrot.slane %v798, 2
        %v800 = vmax.f32 %v798, %v799
        %v801 = vrot.slane %v800, 1
        %v802 = vmax.f32 %v800, %v801
        %v803 = vrot.slane %v672, 4
        %v804 = vmax.f32 %v672, %v803
        %v805 = vrot.slane %v804, 2
        %v806 = vmax.f32 %v804, %v805
        %v807 = vrot.slane %v806, 1
        %v808 = vmax.f32 %v806, %v807
        %v809 = vrot.slane %v674, 4
        %v810 = vmax.f32 %v674, %v809
        %v811 = vrot.slane %v810, 2
        %v812 = vmax.f32 %v810, %v811
        %v813 = vrot.slane %v812, 1
        %v814 = vmax.f32 %v812, %v813
        %v815 = vrot.slane %v676, 4
        %v816 = vmax.f32 %v676, %v815
        %v817 = vrot.slane %v816, 2
        %v818 = vmax.f32 %v816, %v817
        %v819 = vrot.slane %v818, 1
        %v820 = vmax.f32 %v818, %v819
        %v821 = vrot.slane %v678, 4
        %v822 = vmax.f32 %v678, %v821
        %v823 = vrot.slane %v822, 2
        %v824 = vmax.f32 %v822, %v823
        %v825 = vrot.slane %v824, 1
        %v826 = vmax.f32 %v824, %v825
        %v827 = vrot.slane %v680, 4
        %v828 = vmax.f32 %v680, %v827
        %v829 = vrot.slane %v828, 2
        %v830 = vmax.f32 %v828, %v829
        %v831 = vrot.slane %v830, 1
        %v832 = vmax.f32 %v830, %v831
        %v833 = vrot.slane %v682, 4
        %v834 = vmax.f32 %v682, %v833
        %v835 = vrot.slane %v834, 2
        %v836 = vmax.f32 %v834, %v835
        %v837 = vrot.slane %v836, 1
        %v838 = vmax.f32 %v836, %v837
        %v839 = vrot.slane %v684, 4
        %v840 = vmax.f32 %v684, %v839
        %v841 = vrot.slane %v840, 2
        %v842 = vmax.f32 %v840, %v841
        %v843 = vrot.slane %v842, 1
        %v844 = vmax.f32 %v842, %v843
        %v845 = vrot.slane %v686, 4
        %v846 = vmax.f32 %v686, %v845
        %v847 = vrot.slane %v846, 2
        %v848 = vmax.f32 %v846, %v847
        %v849 = vrot.slane %v848, 1
        %v850 = vmax.f32 %v848, %v849
        %v851 = vrot.slane %v688, 4
        %v852 = vmax.f32 %v688, %v851
        %v853 = vrot.slane %v852, 2
        %v854 = vmax.f32 %v852, %v853
        %v855 = vrot.slane %v854, 1
        %v856 = vmax.f32 %v854, %v855
        %v857 = vrot.slane %v690, 4
        %v858 = vmax.f32 %v690, %v857
        %v859 = vrot.slane %v858, 2
        %v860 = vmax.f32 %v858, %v859
        %v861 = vrot.slane %v860, 1
        %v862 = vmax.f32 %v860, %v861
        %v863 = vrot.slane %v692, 4
        %v864 = vmax.f32 %v692, %v863
        %v865 = vrot.slane %v864, 2
        %v866 = vmax.f32 %v864, %v865
        %v867 = vrot.slane %v866, 1
        %v868 = vmax.f32 %v866, %v867
        %v869 = vrot.slane %v694, 4
        %v870 = vmax.f32 %v694, %v869
        %v871 = vrot.slane %v870, 2
        %v872 = vmax.f32 %v870, %v871
        %v873 = vrot.slane %v872, 1
        %v874 = vmax.f32 %v872, %v873
        %v875 = vrot.slane %v696, 4
        %v876 = vmax.f32 %v696, %v875
        %v877 = vrot.slane %v876, 2
        %v878 = vmax.f32 %v876, %v877
        %v879 = vrot.slane %v878, 1
        %v880 = vmax.f32 %v878, %v879
        %v881 = vrot.slane %v698, 4
        %v882 = vmax.f32 %v698, %v881
        %v883 = vrot.slane %v882, 2
        %v884 = vmax.f32 %v882, %v883
        %v885 = vrot.slane %v884, 1
        %v886 = vmax.f32 %v884, %v885
        %v887 = vrot.slane %v700, 4
        %v888 = vmax.f32 %v700, %v887
        %v889 = vrot.slane %v888, 2
        %v890 = vmax.f32 %v888, %v889
        %v891 = vrot.slane %v890, 1
        %v892 = vmax.f32 %v890, %v891
        %v893 = vsub.f32 %v638, %v706
        %v894 = vsub.f32 %v640, %v712
        %v895 = vsub.f32 %v642, %v718
        %v896 = vsub.f32 %v644, %v724
        %v897 = vsub.f32 %v646, %v730
        %v898 = vsub.f32 %v648, %v736
        %v899 = vsub.f32 %v650, %v742
        %v900 = vsub.f32 %v652, %v748
        %v901 = vsub.f32 %v654, %v754
        %v902 = vsub.f32 %v656, %v760
        %v903 = vsub.f32 %v658, %v766
        %v904 = vsub.f32 %v660, %v772
        %v905 = vsub.f32 %v662, %v778
        %v906 = vsub.f32 %v664, %v784
        %v907 = vsub.f32 %v666, %v790
        %v908 = vsub.f32 %v668, %v796
        %v909 = vsub.f32 %v670, %v802
        %v910 = vsub.f32 %v672, %v808
        %v911 = vsub.f32 %v674, %v814
        %v912 = vsub.f32 %v676, %v820
        %v913 = vsub.f32 %v678, %v826
        %v914 = vsub.f32 %v680, %v832
        %v915 = vsub.f32 %v682, %v838
        %v916 = vsub.f32 %v684, %v844
        %v917 = vsub.f32 %v686, %v850
        %v918 = vsub.f32 %v688, %v856
        %v919 = vsub.f32 %v690, %v862
        %v920 = vsub.f32 %v692, %v868
        %v921 = vsub.f32 %v694, %v874
        %v922 = vsub.f32 %v696, %v880
        %v923 = vsub.f32 %v698, %v886
        %v924 = vsub.f32 %v700, %v892
        %v925 = vmul.f32 %v893, 1.442695
        %v926 = vpow.pop %v925
        %v927 = vmul.f32 %v894, 1.442695
        %v928 = vpow.pop %v927
        %v929 = vmul.f32 %v895, 1.442695
        %v930 = vpow.pop %v929
        %v931 = vmul.f32 %v896, 1.442695
        %v932 = vpow.pop %v931
        %v933 = vmul.f32 %v897, 1.442695
        %v934 = vpow.pop %v933
        %v935 = vmul.f32 %v898, 1.442695
        %v936 = vpow.pop %v935
        %v937 = vmul.f32 %v899, 1.442695
        %v938 = vpow.pop %v937
        %v939 = vmul.f32 %v900, 1.442695
        %v940 = vpow.pop %v939
        %v941 = vmul.f32 %v901, 1.442695
        %v942 = vpow.pop %v941
        %v943 = vmul.f32 %v902, 1.442695
        %v944 = vpow.pop %v943
        %v945 = vmul.f32 %v903, 1.442695
        %v946 = vpow.pop %v945
        %v947 = vmul.f32 %v904, 1.442695
        %v948 = vpow.pop %v947
        %v949 = vmul.f32 %v905, 1.442695
        %v950 = vpow.pop %v949
        %v951 = vmul.f32 %v906, 1.442695
        %v952 = vpow.pop %v951
        %v953 = vmul.f32 %v907, 1.442695
        %v954 = vpow.pop %v953
        %v955 = vmul.f32 %v908, 1.442695
        %v956 = vpow.pop %v955
        %v957 = vmul.f32 %v909, 1.442695
        %v958 = vpow.pop %v957
        %v959 = vmul.f32 %v910, 1.442695
        %v960 = vpow.pop %v959
        %v961 = vmul.f32 %v911, 1.442695
        %v962 = vpow.pop %v961
        %v963 = vmul.f32 %v912, 1.442695
        %v964 = vpow.pop %v963
        %v965 = vmul.f32 %v913, 1.442695
        %v966 = vpow.pop %v965
        %v967 = vmul.f32 %v914, 1.442695
        %v968 = vpow.pop %v967
        %v969 = vmul.f32 %v915, 1.442695
        %v970 = vpow.pop %v969
        %v971 = vmul.f32 %v916, 1.442695
        %v972 = vpow.pop %v971
        %v973 = vmul.f32 %v917, 1.442695
        %v974 = vpow.pop %v973
        %v975 = vmul.f32 %v918, 1.442695
        %v976 = vpow.pop %v975
        %v977 = vmul.f32 %v919, 1.442695
        %v978 = vpow.pop %v977
        %v979 = vmul.f32 %v920, 1.442695
        %v980 = vpow.pop %v979
        %v981 = vmul.f32 %v921, 1.442695
        %v982 = vpow.pop %v981
        %v983 = vmul.f32 %v922, 1.442695
        %v984 = vpow.pop %v983
        %v985 = vmul.f32 %v923, 1.442695
        %v986 = vpow.pop %v985
        %v987 = vmul.f32 %v924, 1.442695
        %v988 = vpow.pop %v987
        %v989 = vrot.slane %v926, 4
        %v990 = vadd.f32 %v926, %v989
        %v991 = vrot.slane %v990, 2
        %v992 = vadd.f32 %v990, %v991
        %v993 = vrot.slane %v992, 1
        %v994 = vadd.f32 %v992, %v993
        %v995 = vrot.slane %v928, 4
        %v996 = vadd.f32 %v928, %v995
        %v997 = vrot.slane %v996, 2
        %v998 = vadd.f32 %v996, %v997
        %v999 = vrot.slane %v998, 1
        %v1000 = vadd.f32 %v998, %v999
        %v1001 = vrot.slane %v930, 4
        %v1002 = vadd.f32 %v930, %v1001
        %v1003 = vrot.slane %v1002, 2
        %v1004 = vadd.f32 %v1002, %v1003
        %v1005 = vrot.slane %v1004, 1
        %v1006 = vadd.f32 %v1004, %v1005
        %v1007 = vrot.slane %v932, 4
        %v1008 = vadd.f32 %v932, %v1007
        %v1009 = vrot.slane %v1008, 2
        %v1010 = vadd.f32 %v1008, %v1009
        %v1011 = vrot.slane %v1010, 1
        %v1012 = vadd.f32 %v1010, %v1011
        %v1013 = vrot.slane %v934, 4
        %v1014 = vadd.f32 %v934, %v1013
        %v1015 = vrot.slane %v1014, 2
        %v1016 = vadd.f32 %v1014, %v1015
        %v1017 = vrot.slane %v1016, 1
        %v1018 = vadd.f32 %v1016, %v1017
        %v1019 = vrot.slane %v936, 4
        %v1020 = vadd.f32 %v936, %v1019
        %v1021 = vrot.slane %v1020, 2
        %v1022 = vadd.f32 %v1020, %v1021
        %v1023 = vrot.slane %v1022, 1
        %v1024 = vadd.f32 %v1022, %v1023
        %v1025 = vrot.slane %v938, 4
        %v1026 = vadd.f32 %v938, %v1025
        %v1027 = vrot.slane %v1026, 2
        %v1028 = vadd.f32 %v1026, %v1027
        %v1029 = vrot.slane %v1028, 1
        %v1030 = vadd.f32 %v1028, %v1029
        %v1031 = vrot.slane %v940, 4
        %v1032 = vadd.f32 %v940, %v1031
        %v1033 = vrot.slane %v1032, 2
        %v1034 = vadd.f32 %v1032, %v1033
        %v1035 = vrot.slane %v1034, 1
        %v1036 = vadd.f32 %v1034, %v1035
        %v1037 = vrot.slane %v942, 4
        %v1038 = vadd.f32 %v942, %v1037
        %v1039 = vrot.slane %v1038, 2
        %v1040 = vadd.f32 %v1038, %v1039
        %v1041 = vrot.slane %v1040, 1
        %v1042 = vadd.f32 %v1040, %v1041
        %v1043 = vrot.slane %v944, 4
        %v1044 = vadd.f32 %v944, %v1043
        %v1045 = vrot.slane %v1044, 2
        %v1046 = vadd.f32 %v1044, %v1045
        %v1047 = vrot.slane %v1046, 1
        %v1048 = vadd.f32 %v1046, %v1047
        %v1049 = vrot.slane %v946, 4
        %v1050 = vadd.f32 %v946, %v1049
        %v1051 = vrot.slane %v1050, 2
        %v1052 = vadd.f32 %v1050, %v1051
        %v1053 = vrot.slane %v1052, 1
        %v1054 = vadd.f32 %v1052, %v1053
        %v1055 = vrot.slane %v948, 4
        %v1056 = vadd.f32 %v948, %v1055
        %v1057 = vrot.slane %v1056, 2
        %v1058 = vadd.f32 %v1056, %v1057
        %v1059 = vrot.slane %v1058, 1
        %v1060 = vadd.f32 %v1058, %v1059
        %v1061 = vrot.slane %v950, 4
        %v1062 = vadd.f32 %v950, %v1061
        %v1063 = vrot.slane %v1062, 2
        %v1064 = vadd.f32 %v1062, %v1063
        %v1065 = vrot.slane %v1064, 1
        %v1066 = vadd.f32 %v1064, %v1065
        %v1067 = vrot.slane %v952, 4
        %v1068 = vadd.f32 %v952, %v1067
        %v1069 = vrot.slane %v1068, 2
        %v1070 = vadd.f32 %v1068, %v1069
        %v1071 = vrot.slane %v1070, 1
        %v1072 = vadd.f32 %v1070, %v1071
        %v1073 = vrot.slane %v954, 4
        %v1074 = vadd.f32 %v954, %v1073
        %v1075 = vrot.slane %v1074, 2
        %v1076 = vadd.f32 %v1074, %v1075
        %v1077 = vrot.slane %v1076, 1
        %v1078 = vadd.f32 %v1076, %v1077
        %v1079 = vrot.slane %v956, 4
        %v1080 = vadd.f32 %v956, %v1079
        %v1081 = vrot.slane %v1080, 2
        %v1082 = vadd.f32 %v1080, %v1081
        %v1083 = vrot.slane %v1082, 1
        %v1084 = vadd.f32 %v1082, %v1083
        %v1085 = vrot.slane %v958, 4
        %v1086 = vadd.f32 %v958, %v1085
        %v1087 = vrot.slane %v1086, 2
        %v1088 = vadd.f32 %v1086, %v1087
        %v1089 = vrot.slane %v1088, 1
        %v1090 = vadd.f32 %v1088, %v1089
        %v1091 = vrot.slane %v960, 4
        %v1092 = vadd.f32 %v960, %v1091
        %v1093 = vrot.slane %v1092, 2
        %v1094 = vadd.f32 %v1092, %v1093
        %v1095 = vrot.slane %v1094, 1
        %v1096 = vadd.f32 %v1094, %v1095
        %v1097 = vrot.slane %v962, 4
        %v1098 = vadd.f32 %v962, %v1097
        %v1099 = vrot.slane %v1098, 2
        %v1100 = vadd.f32 %v1098, %v1099
        %v1101 = vrot.slane %v1100, 1
        %v1102 = vadd.f32 %v1100, %v1101
        %v1103 = vrot.slane %v964, 4
        %v1104 = vadd.f32 %v964, %v1103
        %v1105 = vrot.slane %v1104, 2
        %v1106 = vadd.f32 %v1104, %v1105
        %v1107 = vrot.slane %v1106, 1
        %v1108 = vadd.f32 %v1106, %v1107
        %v1109 = vrot.slane %v966, 4
        %v1110 = vadd.f32 %v966, %v1109
        %v1111 = vrot.slane %v1110, 2
        %v1112 = vadd.f32 %v1110, %v1111
        %v1113 = vrot.slane %v1112, 1
        %v1114 = vadd.f32 %v1112, %v1113
        %v1115 = vrot.slane %v968, 4
        %v1116 = vadd.f32 %v968, %v1115
        %v1117 = vrot.slane %v1116, 2
        %v1118 = vadd.f32 %v1116, %v1117
        %v1119 = vrot.slane %v1118, 1
        %v1120 = vadd.f32 %v1118, %v1119
        %v1121 = vrot.slane %v970, 4
        %v1122 = vadd.f32 %v970, %v1121
        %v1123 = vrot.slane %v1122, 2
        %v1124 = vadd.f32 %v1122, %v1123
        %v1125 = vrot.slane %v1124, 1
        %v1126 = vadd.f32 %v1124, %v1125
        %v1127 = vrot.slane %v972, 4
        %v1128 = vadd.f32 %v972, %v1127
        %v1129 = vrot.slane %v1128, 2
        %v1130 = vadd.f32 %v1128, %v1129
        %v1131 = vrot.slane %v1130, 1
        %v1132 = vadd.f32 %v1130, %v1131
        %v1133 = vrot.slane %v974, 4
        %v1134 = vadd.f32 %v974, %v1133
        %v1135 = vrot.slane %v1134, 2
        %v1136 = vadd.f32 %v1134, %v1135
        %v1137 = vrot.slane %v1136, 1
        %v1138 = vadd.f32 %v1136, %v1137
        %v1139 = vrot.slane %v976, 4
        %v1140 = vadd.f32 %v976, %v1139
        %v1141 = vrot.slane %v1140, 2
        %v1142 = vadd.f32 %v1140, %v1141
        %v1143 = vrot.slane %v1142, 1
        %v1144 = vadd.f32 %v1142, %v1143
        %v1145 = vrot.slane %v978, 4
        %v1146 = vadd.f32 %v978, %v1145
        %v1147 = vrot.slane %v1146, 2
        %v1148 = vadd.f32 %v1146, %v1147
        %v1149 = vrot.slane %v1148, 1
        %v1150 = vadd.f32 %v1148, %v1149
        %v1151 = vrot.slane %v980, 4
        %v1152 = vadd.f32 %v980, %v1151
        %v1153 = vrot.slane %v1152, 2
        %v1154 = vadd.f32 %v1152, %v1153
        %v1155 = vrot.slane %v1154, 1
        %v1156 = vadd.f32 %v1154, %v1155
        %v1157 = vrot.slane %v982, 4
        %v1158 = vadd.f32 %v982, %v1157
        %v1159 = vrot.slane %v1158, 2
        %v1160 = vadd.f32 %v1158, %v1159
        %v1161 = vrot.slane %v1160, 1
        %v1162 = vadd.f32 %v1160, %v1161
        %v1163 = vrot.slane %v984, 4
        %v1164 = vadd.f32 %v984, %v1163
        %v1165 = vrot.slane %v1164, 2
        %v1166 = vadd.f32 %v1164, %v1165
        %v1167 = vrot.slane %v1166, 1
        %v1168 = vadd.f32 %v1166, %v1167
        %v1169 = vrot.slane %v986, 4
        %v1170 = vadd.f32 %v986, %v1169
        %v1171 = vrot.slane %v1170, 2
        %v1172 = vadd.f32 %v1170, %v1171
        %v1173 = vrot.slane %v1172, 1
        %v1174 = vadd.f32 %v1172, %v1173
        %v1175 = vrot.slane %v988, 4
        %v1176 = vadd.f32 %v988, %v1175
        %v1177 = vrot.slane %v1176, 2
        %v1178 = vadd.f32 %v1176, %v1177
        %v1179 = vrot.slane %v1178, 1
        %v1180 = vadd.f32 %v1178, %v1179
        %v1181 = vrcp.pop %v994
        %v1182 = vrcp.pop %v1000
        %v1183 = vrcp.pop %v1006
        %v1184 = vrcp.pop %v1012
        %v1185 = vrcp.pop %v1018
        %v1186 = vrcp.pop %v1024
        %v1187 = vrcp.pop %v1030
        %v1188 = vrcp.pop %v1036
        %v1189 = vrcp.pop %v1042
        %v1190 = vrcp.pop %v1048
        %v1191 = vrcp.pop %v1054
        %v1192 = vrcp.pop %v1060
        %v1193 = vrcp.pop %v1066
        %v1194 = vrcp.pop %v1072
        %v1195 = vrcp.pop %v1078
        %v1196 = vrcp.pop %v1084
        %v1197 = vrcp.pop %v1090
        %v1198 = vrcp.pop %v1096
        %v1199 = vrcp.pop %v1102
        %v1200 = vrcp.pop %v1108
        %v1201 = vrcp.pop %v1114
        %v1202 = vrcp.pop %v1120
        %v1203 = vrcp.pop %v1126
        %v1204 = vrcp.pop %v1132
        %v1205 = vrcp.pop %v1138
        %v1206 = vrcp.pop %v1144
        %v1207 = vrcp.pop %v1150
        %v1208 = vrcp.pop %v1156
        %v1209 = vrcp.pop %v1162
        %v1210 = vrcp.pop %v1168
        %v1211 = vrcp.pop %v1174
        %v1212 = vrcp.pop %v1180
        %v1213 = vmul.f32 %v926, %v1181
        %v1214 = vmul.f32 %v928, %v1182
        %v1215 = vmul.f32 %v930, %v1183
        %v1216 = vmul.f32 %v932, %v1184
        %v1217 = vmul.f32 %v934, %v1185
        %v1218 = vmul.f32 %v936, %v1186
        %v1219 = vmul.f32 %v938, %v1187
        %v1220 = vmul.f32 %v940, %v1188
        %v1221 = vmul.f32 %v942, %v1189
        %v1222 = vmul.f32 %v944, %v1190
        %v1223 = vmul.f32 %v946, %v1191
        %v1224 = vmul.f32 %v948, %v1192
        %v1225 = vmul.f32 %v950, %v1193
        %v1226 = vmul.f32 %v952, %v1194
        %v1227 = vmul.f32 %v954, %v1195
        %v1228 = vmul.f32 %v956, %v1196
        %v1229 = vmul.f32 %v958, %v1197
        %v1230 = vmul.f32 %v960, %v1198
        %v1231 = vmul.f32 %v962, %v1199
        %v1232 = vmul.f32 %v964, %v1200
        %v1233 = vmul.f32 %v966, %v1201
        %v1234 = vmul.f32 %v968, %v1202
        %v1235 = vmul.f32 %v970, %v1203
        %v1236 = vmul.f32 %v972, %v1204
        %v1237 = vmul.f32 %v974, %v1205
        %v1238 = vmul.f32 %v976, %v1206
        %v1239 = vmul.f32 %v978, %v1207
        %v1240 = vmul.f32 %v980, %v1208
        %v1241 = vmul.f32 %v982, %v1209
        %v1242 = vmul.f32 %v984, %v1210
        %v1243 = vmul.f32 %v986, %v1211
        %v1244 = vmul.f32 %v988, %v1212
        %v1245 = vmul.f32 %v1213, %v256
        %v1246 = vmul.f32 %v1214, %v257
        %v1247 = vmul.f32 %v1215, %v258
        %v1248 = vmul.f32 %v1216, %v259
        %v1249 = vmul.f32 %v1217, %v260
        %v1250 = vmul.f32 %v1218, %v261
        %v1251 = vmul.f32 %v1219, %v262
        %v1252 = vmul.f32 %v1220, %v263
        %v1253 = vmul.f32 %v1221, %v264
        %v1254 = vmul.f32 %v1222, %v265
        %v1255 = vmul.f32 %v1223, %v266
        %v1256 = vmul.f32 %v1224, %v267
        %v1257 = vmul.f32 %v1225, %v268
        %v1258 = vmul.f32 %v1226, %v269
        %v1259 = vmul.f32 %v1227, %v270
        %v1260 = vmul.f32 %v1228, %v271
        %v1261 = vmul.f32 %v1229, %v272
        %v1262 = vmul.f32 %v1230, %v273
        %v1263 = vmul.f32 %v1231, %v274
        %v1264 = vmul.f32 %v1232, %v275
        %v1265 = vmul.f32 %v1233, %v276
        %v1266 = vmul.f32 %v1234, %v277
        %v1267 = vmul.f32 %v1235, %v278
        %v1268 = vmul.f32 %v1236, %v279
        %v1269 = vmul.f32 %v1237, %v280
        %v1270 = vmul.f32 %v1238, %v281
        %v1271 = vmul.f32 %v1239, %v282
        %v1272 = vmul.f32 %v1240, %v283
        %v1273 = vmul.f32 %v1241, %v284
        %v1274 = vmul.f32 %v1242, %v285
        %v1275 = vmul.f32 %v1243, %v286
        %v1276 = vmul.f32 %v1244, %v287
        %v1277 = vrot.slane %v1245, 4
        %v1278 = vadd.f32 %v1245, %v1277
        %v1279 = vrot.slane %v1278, 2
        %v1280 = vadd.f32 %v1278, %v1279
        %v1281 = vrot.slane %v1280, 1
        %v1282 = vadd.f32 %v1280, %v1281
        %v1283 = vrot.slane %v1246, 4
        %v1284 = vadd.f32 %v1246, %v1283
        %v1285 = vrot.slane %v1284, 2
        %v1286 = vadd.f32 %v1284, %v1285
        %v1287 = vrot.slane %v1286, 1
        %v1288 = vadd.f32 %v1286, %v1287
        %v1289 = vrot.slane %v1247, 4
        %v1290 = vadd.f32 %v1247, %v1289
        %v1291 = vrot.slane %v1290, 2
        %v1292 = vadd.f32 %v1290, %v1291
        %v1293 = vrot.slane %v1292, 1
        %v1294 = vadd.f32 %v1292, %v1293
        %v1295 = vrot.slane %v1248, 4
        %v1296 = vadd.f32 %v1248, %v1295
        %v1297 = vrot.slane %v1296, 2
        %v1298 = vadd.f32 %v1296, %v1297
        %v1299 = vrot.slane %v1298, 1
        %v1300 = vadd.f32 %v1298, %v1299
        %v1301 = vrot.slane %v1249, 4
        %v1302 = vadd.f32 %v1249, %v1301
        %v1303 = vrot.slane %v1302, 2
        %v1304 = vadd.f32 %v1302, %v1303
        %v1305 = vrot.slane %v1304, 1
        %v1306 = vadd.f32 %v1304, %v1305
        %v1307 = vrot.slane %v1250, 4
        %v1308 = vadd.f32 %v1250, %v1307
        %v1309 = vrot.slane %v1308, 2
        %v1310 = vadd.f32 %v1308, %v1309
        %v1311 = vrot.slane %v1310, 1
        %v1312 = vadd.f32 %v1310, %v1311
        %v1313 = vrot.slane %v1251, 4
        %v1314 = vadd.f32 %v1251, %v1313
        %v1315 = vrot.slane %v1314, 2
        %v1316 = vadd.f32 %v1314, %v1315
        %v1317 = vrot.slane %v1316, 1
        %v1318 = vadd.f32 %v1316, %v1317
        %v1319 = vrot.slane %v1252, 4
        %v1320 = vadd.f32 %v1252, %v1319
        %v1321 = vrot.slane %v1320, 2
        %v1322 = vadd.f32 %v1320, %v1321
        %v1323 = vrot.slane %v1322, 1
        %v1324 = vadd.f32 %v1322, %v1323
        %v1325 = vrot.slane %v1253, 4
        %v1326 = vadd.f32 %v1253, %v1325
        %v1327 = vrot.slane %v1326, 2
        %v1328 = vadd.f32 %v1326, %v1327
        %v1329 = vrot.slane %v1328, 1
        %v1330 = vadd.f32 %v1328, %v1329
        %v1331 = vrot.slane %v1254, 4
        %v1332 = vadd.f32 %v1254, %v1331
        %v1333 = vrot.slane %v1332, 2
        %v1334 = vadd.f32 %v1332, %v1333
        %v1335 = vrot.slane %v1334, 1
        %v1336 = vadd.f32 %v1334, %v1335
        %v1337 = vrot.slane %v1255, 4
        %v1338 = vadd.f32 %v1255, %v1337
        %v1339 = vrot.slane %v1338, 2
        %v1340 = vadd.f32 %v1338, %v1339
        %v1341 = vrot.slane %v1340, 1
        %v1342 = vadd.f32 %v1340, %v1341
        %v1343 = vrot.slane %v1256, 4
        %v1344 = vadd.f32 %v1256, %v1343
        %v1345 = vrot.slane %v1344, 2
        %v1346 = vadd.f32 %v1344, %v1345
        %v1347 = vrot.slane %v1346, 1
        %v1348 = vadd.f32 %v1346, %v1347
        %v1349 = vrot.slane %v1257, 4
        %v1350 = vadd.f32 %v1257, %v1349
        %v1351 = vrot.slane %v1350, 2
        %v1352 = vadd.f32 %v1350, %v1351
        %v1353 = vrot.slane %v1352, 1
        %v1354 = vadd.f32 %v1352, %v1353
        %v1355 = vrot.slane %v1258, 4
        %v1356 = vadd.f32 %v1258, %v1355
        %v1357 = vrot.slane %v1356, 2
        %v1358 = vadd.f32 %v1356, %v1357
        %v1359 = vrot.slane %v1358, 1
        %v1360 = vadd.f32 %v1358, %v1359
        %v1361 = vrot.slane %v1259, 4
        %v1362 = vadd.f32 %v1259, %v1361
        %v1363 = vrot.slane %v1362, 2
        %v1364 = vadd.f32 %v1362, %v1363
        %v1365 = vrot.slane %v1364, 1
        %v1366 = vadd.f32 %v1364, %v1365
        %v1367 = vrot.slane %v1260, 4
        %v1368 = vadd.f32 %v1260, %v1367
        %v1369 = vrot.slane %v1368, 2
        %v1370 = vadd.f32 %v1368, %v1369
        %v1371 = vrot.slane %v1370, 1
        %v1372 = vadd.f32 %v1370, %v1371
        %v1373 = vrot.slane %v1261, 4
        %v1374 = vadd.f32 %v1261, %v1373
        %v1375 = vrot.slane %v1374, 2
        %v1376 = vadd.f32 %v1374, %v1375
        %v1377 = vrot.slane %v1376, 1
        %v1378 = vadd.f32 %v1376, %v1377
        %v1379 = vrot.slane %v1262, 4
        %v1380 = vadd.f32 %v1262, %v1379
        %v1381 = vrot.slane %v1380, 2
        %v1382 = vadd.f32 %v1380, %v1381
        %v1383 = vrot.slane %v1382, 1
        %v1384 = vadd.f32 %v1382, %v1383
        %v1385 = vrot.slane %v1263, 4
        %v1386 = vadd.f32 %v1263, %v1385
        %v1387 = vrot.slane %v1386, 2
        %v1388 = vadd.f32 %v1386, %v1387
        %v1389 = vrot.slane %v1388, 1
        %v1390 = vadd.f32 %v1388, %v1389
        %v1391 = vrot.slane %v1264, 4
        %v1392 = vadd.f32 %v1264, %v1391
        %v1393 = vrot.slane %v1392, 2
        %v1394 = vadd.f32 %v1392, %v1393
        %v1395 = vrot.slane %v1394, 1
        %v1396 = vadd.f32 %v1394, %v1395
        %v1397 = vrot.slane %v1265, 4
        %v1398 = vadd.f32 %v1265, %v1397
        %v1399 = vrot.slane %v1398, 2
        %v1400 = vadd.f32 %v1398, %v1399
        %v1401 = vrot.slane %v1400, 1
        %v1402 = vadd.f32 %v1400, %v1401
        %v1403 = vrot.slane %v1266, 4
        %v1404 = vadd.f32 %v1266, %v1403
        %v1405 = vrot.slane %v1404, 2
        %v1406 = vadd.f32 %v1404, %v1405
        %v1407 = vrot.slane %v1406, 1
        %v1408 = vadd.f32 %v1406, %v1407
        %v1409 = vrot.slane %v1267, 4
        %v1410 = vadd.f32 %v1267, %v1409
        %v1411 = vrot.slane %v1410, 2
        %v1412 = vadd.f32 %v1410, %v1411
        %v1413 = vrot.slane %v1412, 1
        %v1414 = vadd.f32 %v1412, %v1413
        %v1415 = vrot.slane %v1268, 4
        %v1416 = vadd.f32 %v1268, %v1415
        %v1417 = vrot.slane %v1416, 2
        %v1418 = vadd.f32 %v1416, %v1417
        %v1419 = vrot.slane %v1418, 1
        %v1420 = vadd.f32 %v1418, %v1419
        %v1421 = vrot.slane %v1269, 4
        %v1422 = vadd.f32 %v1269, %v1421
        %v1423 = vrot.slane %v1422, 2
        %v1424 = vadd.f32 %v1422, %v1423
        %v1425 = vrot.slane %v1424, 1
        %v1426 = vadd.f32 %v1424, %v1425
        %v1427 = vrot.slane %v1270, 4
        %v1428 = vadd.f32 %v1270, %v1427
        %v1429 = vrot.slane %v1428, 2
        %v1430 = vadd.f32 %v1428, %v1429
        %v1431 = vrot.slane %v1430, 1
        %v1432 = vadd.f32 %v1430, %v1431
        %v1433 = vrot.slane %v1271, 4
        %v1434 = vadd.f32 %v1271, %v1433
        %v1435 = vrot.slane %v1434, 2
        %v1436 = vadd.f32 %v1434, %v1435
        %v1437 = vrot.slane %v1436, 1
        %v1438 = vadd.f32 %v1436, %v1437
        %v1439 = vrot.slane %v1272, 4
        %v1440 = vadd.f32 %v1272, %v1439
        %v1441 = vrot.slane %v1440, 2
        %v1442 = vadd.f32 %v1440, %v1441
        %v1443 = vrot.slane %v1442, 1
        %v1444 = vadd.f32 %v1442, %v1443
        %v1445 = vrot.slane %v1273, 4
        %v1446 = vadd.f32 %v1273, %v1445
        %v1447 = vrot.slane %v1446, 2
        %v1448 = vadd.f32 %v1446, %v1447
        %v1449 = vrot.slane %v1448, 1
        %v1450 = vadd.f32 %v1448, %v1449
        %v1451 = vrot.slane %v1274, 4
        %v1452 = vadd.f32 %v1274, %v1451
        %v1453 = vrot.slane %v1452, 2
        %v1454 = vadd.f32 %v1452, %v1453
        %v1455 = vrot.slane %v1454, 1
        %v1456 = vadd.f32 %v1454, %v1455
        %v1457 = vrot.slane %v1275, 4
        %v1458 = vadd.f32 %v1275, %v1457
        %v1459 = vrot.slane %v1458, 2
        %v1460 = vadd.f32 %v1458, %v1459
        %v1461 = vrot.slane %v1460, 1
        %v1462 = vadd.f32 %v1460, %v1461
        %v1463 = vrot.slane %v1276, 4
        %v1464 = vadd.f32 %v1276, %v1463
        %v1465 = vrot.slane %v1464, 2
        %v1466 = vadd.f32 %v1464, %v1465
        %v1467 = vrot.slane %v1466, 1
        %v1468 = vadd.f32 %v1466, %v1467
        %vm1501 = vcmask 1041409
        %v1502 = vsel %vm1501, %v1288, %v1282
        %vm1503 = vcmask 1042434
        %v1504 = vsel %vm1503, %v1294, %v1502
        %vm1505 = vcmask 1043459
        %v1506 = vsel %vm1505, %v1300, %v1504
        %vm1507 = vcmask 1044484
        %v1508 = vsel %vm1507, %v1306, %v1506
        %vm1509 = vcmask 1045509
        %v1510 = vsel %vm1509, %v1312, %v1508
        %vm1511 = vcmask 1046534
        %v1512 = vsel %vm1511, %v1318, %v1510
        %vm1513 = vcmask 1047559
        %v1514 = vsel %vm1513, %v1324, %v1512
        %v1515 = vsel %vm1501, %v1336, %v1330
        %v1516 = vsel %vm1503, %v1342, %v1515
        %v1517 = vsel %vm1505, %v1348, %v1516
        %v1518 = vsel %vm1507, %v1354, %v1517
        %v1519 = vsel %vm1509, %v1360, %v1518
        %v1520 = vsel %vm1511, %v1366, %v1519
        %v1521 = vsel %vm1513, %v1372, %v1520
        %v1522 = vsel %vm1501, %v1384, %v1378
        %v1523 = vsel %vm1503, %v1390, %v1522
        %v1524 = vsel %vm1505, %v1396, %v1523
        %v1525 = vsel %vm1507, %v1402, %v1524
        %v1526 = vsel %vm1509, %v1408, %v1525
        %v1527 = vsel %vm1511, %v1414, %v1526
        %v1528 = vsel %vm1513, %v1420, %v1527
        %v1529 = vsel %vm1501, %v1432, %v1426
        %v1530 = vsel %vm1503, %v1438, %v1529
        %v1531 = vsel %vm1505, %v1444, %v1530
        %v1532 = vsel %vm1507, %v1450, %v1531
        %v1533 = vsel %vm1509, %v1456, %v1532
        %v1534 = vsel %vm1511, %v1462, %v1533
        %v1535 = vsel %vm1513, %v1468, %v1534
        %1540 = vst [vmem:[%s223] sm:$0xff] %v1514
        %1541 = vst [vmem:[%s223 + $0x8] sm:$0xff] %v1521
        %1542 = vst [vmem:[%s223 + $0x10] sm:$0xff] %v1528
        %1543 = vst [vmem:[%s223 + $0x18] sm:$0xff] %v1535
        %s1544 = sand.u32 %s102, 1
        %s1545 = scalar_lea.sflag [#allocation4], %s1544
        %s1546 = sand.u32 %s102, 1
        %s1547 = smul.addr %s1546, 32
        %s1548 = scalar_lea.vmem [#allocation7], %s1547
        // Predicated region
        $region41: #{tpu_custom_call.1} parent=31 // pred_check
          %p1549 = pneg %p112
        $region42: #{tpu_custom_call.1} parent=31 // pred_check_branch
          %1551 = sbr.rel (%p1549) target = $region44
        $region43: #{tpu_custom_call.1} parent=31 // pred_region
          %s1552 = smul.u32 4, %s21
          %1554 = vsyncadd %s1545, 0
          %s1555 = smul.addr %s1552, 8
          %s1556 = scalar_lea.hbm %s3, %s1555
          %s1557 = sshll.u32 %s1548, 4
          %s1558 = int_to_ptr.vmem [resolvable:$true] %s1557
          %s1559 = sshll.u32 %s1556, 4
          %s1560 = int_to_ptr.hbm [resolvable:$true] %s1559
          %1565 = dma.vmem_to_hbm [thread:$0]  %s1558, 512, %s1560, %s1545, 128, 128, 8
        $region44: #{tpu_custom_call.1} parent=31 // pred_fallthru
          _
      $region32: #{tpu_custom_call.1} parent=5 // pred_fallthru
        _
      %p1566 = scmp.le.s32.totalorder 2, %s16
      // Predicated region
      $region45: #{tpu_custom_call.1} parent=5 // pred_check
        %p1567 = pneg %p1566
      $region46: #{tpu_custom_call.1} parent=5 // pred_check_branch
        %1569 = sbr.rel (%p1567) target = $region48
      $region47: #{tpu_custom_call.1} parent=5 // pred_region
        %s1570 = ssub.s32 %s16, 2
        // Predicated region
        $region49: #{tpu_custom_call.1} parent=47 // pred_check
          %p1571 = pneg %p118
        $region50: #{tpu_custom_call.1} parent=47 // pred_check_branch
          %1573 = sbr.rel (%p1571) target = $region52
        $region51: #{tpu_custom_call.1} parent=47 // pred_region
          %s1574 = sand.u32 %s103, 1
          %s1575 = scalar_lea.sflag [#allocation4], %s1574
          %s1576 = sand.u32 %s103, 1
          %s1577 = smul.addr %s1576, 32
          %s1578 = scalar_lea.vmem [#allocation7], %s1577
          %1580 = dma.done %s1575, 512
        $region52: #{tpu_custom_call.1} parent=47 // pred_fallthru
          _
      $region48: #{tpu_custom_call.1} parent=5 // pred_fallthru
        _
    $region6: #{tpu_custom_call.1} parent=1 // loop_footer
      %s20 = sadd.s32 1, %s16
    $region7: #{tpu_custom_call.1} parent=1 // loop_footer_branch
      %15 = sbr.rel target = $region3
    $region8: #{tpu_custom_call.1} parent=1 // loop_exit
      _
    %1581 = vsyncpa [#allocation3], 1
    %s1582 = scalar_lea.sflag [#allocation3], 1
    %1583 = vsyncpa %s1582, 1
    %1584 = vsyncpa [#allocation6], 1
    %1585 = vsyncpa [#allocation4], 1
    %s1586 = scalar_lea.sflag [#allocation4], 1
    %1587 = vsyncpa %s1586, 1

</llo_original>
